<compile_context>
chip_gen: v6e
topology: v6e:2x2x1
jax: 0.10.0
libtpu: 0.0.40
codegen_flags: <defaults>
</compile_context>

<pallas_src>
import functools

import jax
import jax.numpy as jnp
from jax import lax
from jax.experimental import pallas as pl
from jax.experimental.pallas import tpu as pltpu


def _embed_concat_kernel(ix_ref, iy_ref, tab_ref, out_ref, *, num_x_pad):
    # ix_ref, iy_ref : VMEM (BLOCK_N, 1) int32 -- per-block indices
    # tab_ref        : VMEM (num_x_pad + num_y_pad, D_pad) -- packed block-diag table
    # out_ref        : VMEM (BLOCK_N, D_pad)
    block_n = out_ref.shape[0]
    k = tab_ref.shape[0]

    ix = ix_ref[...]                      # (BLOCK_N, 1), selects rows [0, num_x_pad)
    iy = iy_ref[...] + num_x_pad          # (BLOCK_N, 1), selects rows [num_x_pad, k)

    # Combined one-hot over the packed vocab axis: exactly one hit per table half,
    # so onehot @ tab == concat(Tx[ix], Ty[iy]) exactly (0/1 weights, f32 acc).
    col = lax.broadcasted_iota(jnp.int32, (block_n, k), 1)
    onehot = jnp.logical_or(col == ix, col == iy).astype(tab_ref.dtype)

    out_ref[...] = jnp.dot(
        onehot, tab_ref[...], preferred_element_type=jnp.float32
    ).astype(out_ref.dtype)


def node_feature_embedding(idx, table_x, table_y, *, block_n=512):
    """idx: [N, 2] int; table_x: [num_x, emb_x]; table_y: [num_y, emb_y]."""
    n = idx.shape[0]
    num_x, emb_x = table_x.shape
    num_y, emb_y = table_y.shape
    d = emb_x + emb_y

    # Lane-align the packed vocab (MXU K / iota lanes) and the output width.
    num_x_pad = pl.cdiv(num_x, 128) * 128
    num_y_pad = pl.cdiv(num_y, 128) * 128
    d_pad = pl.cdiv(d, 128) * 128

    # Pack both tables into one block-diagonal, VMEM-resident table (done once,
    # outside the kernel):  rows [0,num_x) x cols [0,emb_x) = Tx,
    #                       rows [num_x_pad, num_x_pad+num_y) x cols [emb_x, d) = Ty.
    tab = jnp.zeros((num_x_pad + num_y_pad, d_pad), table_x.dtype)
    tab = tab.at[:num_x, :emb_x].set(table_x)
    tab = tab.at[num_x_pad:num_x_pad + num_y, emb_x:d].set(
        table_y.astype(table_x.dtype))

    # Pad N up to a multiple of BLOCK_N (pad rows use index 0; sliced off below).
    n_pad = pl.cdiv(n, block_n) * block_n
    idx_i32 = idx.astype(jnp.int32)
    idx_x = jnp.zeros((n_pad, 1), jnp.int32).at[:n, 0].set(idx_i32[:, 0])
    idx_y = jnp.zeros((n_pad, 1), jnp.int32).at[:n, 0].set(idx_i32[:, 1])

    grid = (n_pad // block_n,)

    out = pl.pallas_call(
        functools.partial(_embed_concat_kernel, num_x_pad=num_x_pad),
        out_shape=jax.ShapeDtypeStruct((n_pad, d_pad), table_x.dtype),
        grid_spec=pltpu.PrefetchScalarGridSpec(
            num_scalar_prefetch=0,
            grid=grid,
            in_specs=[
                # Per-block index columns.
                pl.BlockSpec((block_n, 1), lambda i: (i, 0)),
                pl.BlockSpec((block_n, 1), lambda i: (i, 0)),
                # Packed table, VMEM-resident across all grid steps.
                pl.BlockSpec(tab.shape, lambda i: (0, 0)),
            ],
            out_specs=pl.BlockSpec((block_n, d_pad), lambda i: (i, 0)),
        ),
        compiler_params=pltpu.CompilerParams(
            dimension_semantics=("parallel",),
        ),
    )(idx_x, idx_y, tab)

    return out[:n, :d]


if __name__ == "__main__":
    # Small deterministic setup (matches nn.Embedding(num_x, emb_x) / (num_y, emb_y)).
    NUM_X, NUM_Y = 16, 24
    EMB_X, EMB_Y = 128, 128
    N = 1000  # not a multiple of BLOCK_N -> exercises the padding path

    key = jax.random.PRNGKey(0)
    k_tx, k_ty, k_ix, k_iy = jax.random.split(key, 4)

    # nn.Embedding default init: N(0, 1)
    table_x = jax.random.normal(k_tx, (NUM_X, EMB_X), dtype=jnp.float32)
    table_y = jax.random.normal(k_ty, (NUM_Y, EMB_Y), dtype=jnp.float32)

    idx_x = jax.random.randint(k_ix, (N,), 0, NUM_X, dtype=jnp.int32)
    idx_y = jax.random.randint(k_iy, (N,), 0, NUM_Y, dtype=jnp.int32)
    idx = jnp.stack([idx_x, idx_y], axis=1)  # [N, 2], like the PyTorch input x

    out = node_feature_embedding(idx, table_x, table_y)
    out = jax.block_until_ready(out)

    # Reference check (pure JAX)
    ref = jnp.concatenate(
        [jnp.take(table_x, idx[:, 0], axis=0),
         jnp.take(table_y, idx[:, 1], axis=0)],
        axis=-1,
    )
    assert out.shape == (N, EMB_X + EMB_Y)
    assert jnp.allclose(out, ref), "Pallas output mismatch vs reference gather"

    print("KERNEL_OK")
</pallas_src>

<mosaic_0001>
module attributes {stable_mosaic.version = 11 : i64} {
  func.func @_embed_concat_kernel(%arg0: i32, %arg1: memref<512x1xi32, #tpu.memory_space<vmem>>, %arg2: memref<512x1xi32, #tpu.memory_space<vmem>>, %arg3: memref<256x256xf32, #tpu.memory_space<vmem>>, %arg4: memref<512x256xf32, #tpu.memory_space<vmem>>) attributes {dimension_semantics = [#tpu.dimension_semantics<parallel>], iteration_bounds = array<i64: 2>, scalar_prefetch = 0 : i64, scratch_operands = 0 : i64, tpu.core_type = #tpu.core_type<tc>, window_params = [{transform_indices = @transform_0, window_bounds = array<i64: 512, 1>}, {transform_indices = @transform_1, window_bounds = array<i64: 512, 1>}, {pipeline_mode = #tpu.pipeline_mode<synchronous>, transform_indices = @transform_2, window_bounds = array<i64: 256, 256>}, {transform_indices = @transform_3, window_bounds = array<i64: 512, 256>}]} {
    %c0 = arith.constant 0 : index
    %c0_0 = arith.constant 0 : index
    %0 = vector.load %arg1[%c0, %c0_0] : memref<512x1xi32, #tpu.memory_space<vmem>>, vector<512x1xi32>
    %c0_1 = arith.constant 0 : index
    %c0_2 = arith.constant 0 : index
    %1 = vector.load %arg2[%c0_1, %c0_2] : memref<512x1xi32, #tpu.memory_space<vmem>>, vector<512x1xi32>
    %c128_i32 = arith.constant 128 : i32
    %2 = vector.broadcast %c128_i32 : i32 to vector<512x1xi32>
    %3 = arith.addi %1, %2 : vector<512x1xi32>
    %4 = tpu.iota {dimensions = array<i32: 1>} : vector<512x256xi32>
    %5 = vector.broadcast %0 : vector<512x1xi32> to vector<512x256xi32>
    %6 = arith.cmpi eq, %4, %5 : vector<512x256xi32>
    %7 = vector.broadcast %3 : vector<512x1xi32> to vector<512x256xi32>
    %8 = arith.cmpi eq, %4, %7 : vector<512x256xi32>
    %9 = arith.ori %6, %8 : vector<512x256xi1>
    %10 = arith.extui %9 : vector<512x256xi1> to vector<512x256xi32>
    %11 = arith.sitofp %10 : vector<512x256xi32> to vector<512x256xf32>
    %c0_3 = arith.constant 0 : index
    %c0_4 = arith.constant 0 : index
    %12 = vector.load %arg3[%c0_3, %c0_4] : memref<256x256xf32, #tpu.memory_space<vmem>>, vector<256x256xf32>
    %cst = arith.constant dense<0.000000e+00> : vector<512x256xf32>
    %13 = tpu.matmul %11, %12, %cst {dimension_numbers = #tpu.dot_dimension_numbers<[1], [0], [0], [1], [0, 0, 1, 1], [], []>} : vector<512x256xf32>, vector<256x256xf32>, vector<512x256xf32> -> vector<512x256xf32>
    %c0_5 = arith.constant 0 : index
    %c0_6 = arith.constant 0 : index
    %14 = vector.load %arg4[%c0_5, %c0_6] : memref<512x256xf32, #tpu.memory_space<vmem>>, vector<512x256xf32>
    tpu.vector_store %arg4[%c0_5, %c0_6], %13 {strides = array<i32>} : memref<512x256xf32, #tpu.memory_space<vmem>>, vector<512x256xf32>,
    return
  }
  func.func @transform_0(%arg0: i32) -> (i32, i32) {
    %c0_i32 = arith.constant 0 : i32
    %c0_i32_0 = arith.constant 0 : i32
    return %arg0, %c0_i32 : i32, i32
  }
  func.func @transform_1(%arg0: i32) -> (i32, i32) {
    %c0_i32 = arith.constant 0 : i32
    %c0_i32_0 = arith.constant 0 : i32
    return %arg0, %c0_i32 : i32, i32
  }
  func.func @transform_2(%arg0: i32) -> (i32, i32) {
    %c0_i32 = arith.constant 0 : i32
    %c0_i32_0 = arith.constant 0 : i32
    %c0_i32_1 = arith.constant 0 : i32
    return %c0_i32, %c0_i32_0 : i32, i32
  }
  func.func @transform_3(%arg0: i32) -> (i32, i32) {
    %c0_i32 = arith.constant 0 : i32
    %c0_i32_0 = arith.constant 0 : i32
    return %arg0, %c0_i32 : i32, i32
  }
}

</mosaic_0001>

<llo_original>
// kernel: tpu_custom_call.1
$region0: #{tpu_custom_call.1}
  #allocation0 [shape = 'u32[]', space=smem, size = 0x4, offset = 0x4, fixed_abs, tag = 'smem constant byte address 0x4 - core index']
  #allocation1 [shape = 'u32[144,128]{1,0:T(1,128)}', space=vmem, size = 0x12000, scoped, tag = 'internal scratch']
  %s0 = inlined_call_operand.vmem [shape: s32[1024,1], index: 0, kind: input, shape index: {}]
  %s1 = inlined_call_operand.vmem [shape: s32[1024,1], index: 1, kind: input, shape index: {}]
  %s2 = inlined_call_operand.vmem [shape: f32[256,256], index: 2, kind: input, shape index: {}]
  %s3 = inlined_call_operand.hbm [shape: f32[1024,256], index: 3, kind: output, shape index: {}]
  %s4 = sld [smem:[#allocation0]]
  $region45: #{tpu_custom_call.1} parent=0
    _
  %s6 = ssub.s32 1, %s4
  %s7 = scalar_select 0, %s6, %s4
  $region1: #{tpu_custom_call.1} parent=0
    #allocation2 [shape = 'u8[1048576]{0}', space=vmem, size = 0x100000, scoped, tag = 'output window, operand 0']
    #allocation3 [shape = 's32[2]{0}', space=sflag, size = 0x8, scoped, tag = 'scoped memory for tpu_custom_call.1']
    %8 = vsyncpa [#allocation3], 0
    %s9 = scalar_lea.sflag [#allocation3], 1
    %10 = vsyncpa %s9, 0
    loop: start=0, step=1, limit=4
    $region2: #{tpu_custom_call.1} parent=1 // loop_pre_header
      _
    $region3: #{tpu_custom_call.1} parent=1 // loop_header
      %s12 = sphi 0, %s16
      %p13 = scmp.ge.s32.totalorder %s12, 4
      %s22 = sphi 0, %s24
      %s25 = sphi 0, %s22
      %s26 = sphi 0, %s25
      %s42 = sphi 0, %s26
      %s48 = sphi 0, %s50
      %s51 = sphi 0, %s48
      %s52 = sphi 0, %s51
      %s68 = sphi 0, %s52
      %s72 = sphi 0, %s72
      %s74 = sphi 0, %s72
      %s75 = sphi 0, %s74
      %s89 = sphi 0, %s75
      %s95 = sphi 0, %s97
      %s98 = sphi 0, %s95
      %s99 = sphi 0, %s98
      %s115 = sphi 0, %s99
    $region4: #{tpu_custom_call.1} parent=1 // loop_header_branch
      %15 = sbr.rel (%p13) target = $region8
    $region5: #{tpu_custom_call.1} parent=1 // loop_body
      %s17 = ssub.s32 %s12, 1
      %s18 = ssub.s32 %s12, 2
      %s19 = sadd.s32 %s12, 1
      %s20 = ssub.s32 %s12, %s19
      %p21 = scmp.eq.s32.totalorder %s20, 0
      %s23 = sadd.s32 %s22, 1
      %s24 = scalar_select %p21, %s22, %s23
      %p27 = pneg %p21
      %p28 = scmp.eq.s32.totalorder %s12, 1
      %p29 = por %p27, %p28
      %p30 = scmp.ne.s32.totalorder %s22, %s25
      %p31 = scmp.eq.s32.totalorder %s12, 0
      %p32 = por %p30, %p31
      %p33 = scmp.ne.s32.totalorder %s22, %s25
      %p34 = scmp.eq.s32.totalorder %s17, 1
      %p35 = por %p33, %p34
      %p36 = scmp.ne.s32.totalorder %s25, %s26
      %p37 = scmp.eq.s32.totalorder %s17, 0
      %p38 = por %p36, %p37
      %p39 = scmp.ne.s32.totalorder %s25, %s26
      %p40 = scmp.eq.s32.totalorder %s18, 1
      %p41 = por %p39, %p40
      %p43 = scmp.ne.s32.totalorder %s26, %s42
      %p44 = scmp.eq.s32.totalorder %s18, 0
      %p45 = por %p43, %p44
      %s46 = ssub.s32 %s12, %s19
      %p47 = scmp.eq.s32.totalorder %s46, 0
      %s49 = sadd.s32 %s48, 1
      %s50 = scalar_select %p47, %s48, %s49
      %p53 = pneg %p47
      %p54 = scmp.eq.s32.totalorder %s12, 1
      %p55 = por %p53, %p54
      %p56 = scmp.ne.s32.totalorder %s48, %s51
      %p57 = scmp.eq.s32.totalorder %s12, 0
      %p58 = por %p56, %p57
      %p59 = scmp.ne.s32.totalorder %s48, %s51
      %p60 = scmp.eq.s32.totalorder %s17, 1
      %p61 = por %p59, %p60
      %p62 = scmp.ne.s32.totalorder %s51, %s52
      %p63 = scmp.eq.s32.totalorder %s17, 0
      %p64 = por %p62, %p63
      %p65 = scmp.ne.s32.totalorder %s51, %s52
      %p66 = scmp.eq.s32.totalorder %s18, 1
      %p67 = por %p65, %p66
      %p69 = scmp.ne.s32.totalorder %s52, %s68
      %p70 = scmp.eq.s32.totalorder %s18, 0
      %p71 = por %p69, %p70
      %s73 = sadd.s32 %s72, 1
      %p76 = scmp.eq.s32.totalorder %s12, 1
      %p77 = scmp.ne.s32.totalorder %s72, %s74
      %p78 = scmp.eq.s32.totalorder %s12, 0
      %p79 = por %p77, %p78
      %p80 = scmp.ne.s32.totalorder %s72, %s74
      %p81 = scmp.eq.s32.totalorder %s17, 1
      %p82 = por %p80, %p81
      %p83 = scmp.ne.s32.totalorder %s74, %s75
      %p84 = scmp.eq.s32.totalorder %s17, 0
      %p85 = por %p83, %p84
      %p86 = scmp.ne.s32.totalorder %s74, %s75
      %p87 = scmp.eq.s32.totalorder %s18, 1
      %p88 = por %p86, %p87
      %p90 = scmp.ne.s32.totalorder %s75, %s89
      %p91 = scmp.eq.s32.totalorder %s18, 0
      %p92 = por %p90, %p91
      %s93 = ssub.s32 %s12, %s19
      %p94 = scmp.eq.s32.totalorder %s93, 0
      %s96 = sadd.s32 %s95, 1
      %s97 = scalar_select %p94, %s95, %s96
      %p100 = pneg %p94
      %p101 = scmp.eq.s32.totalorder %s12, 1
      %p102 = por %p100, %p101
      %p103 = scmp.ne.s32.totalorder %s95, %s98
      %p104 = scmp.eq.s32.totalorder %s12, 0
      %p105 = por %p103, %p104
      %p106 = scmp.ne.s32.totalorder %s95, %s98
      %p107 = scmp.eq.s32.totalorder %s17, 1
      %p108 = por %p106, %p107
      %p109 = scmp.ne.s32.totalorder %s98, %s99
      %p110 = scmp.eq.s32.totalorder %s17, 0
      %p111 = por %p109, %p110
      %p112 = scmp.ne.s32.totalorder %s98, %s99
      %p113 = scmp.eq.s32.totalorder %s18, 1
      %p114 = por %p112, %p113
      %p116 = scmp.ne.s32.totalorder %s99, %s115
      %p117 = scmp.eq.s32.totalorder %s18, 0
      %p118 = por %p116, %p117
      %p119 = scmp.le.s32.totalorder 1, %s12
      %p120 = scmp.lt.s32.totalorder %s12, 3
      %p121 = pnand %p119, %p120
      %p122 = pneg %p121
      // Predicated region
      $region9: #{tpu_custom_call.1} parent=5 // pred_check
        _
      $region10: #{tpu_custom_call.1} parent=5 // pred_check_branch
        %124 = sbr.rel (%p121) target = $region12
      $region11: #{tpu_custom_call.1} parent=5 // pred_region
        %s125 = ssub.s32 %s12, 1
        // Predicated region
        $region13: #{tpu_custom_call.1} parent=11 // pred_check
          %p126 = pneg %p85
        $region14: #{tpu_custom_call.1} parent=11 // pred_check_branch
          %128 = sbr.rel (%p126) target = $region16
        $region15: #{tpu_custom_call.1} parent=11 // pred_region
          _
        $region16: #{tpu_custom_call.1} parent=11 // pred_fallthru
          _
      $region12: #{tpu_custom_call.1} parent=5 // pred_fallthru
        _
      %p129 = scmp.lt.s32.totalorder %s12, 2
      // Predicated region
      $region17: #{tpu_custom_call.1} parent=5 // pred_check
        %p130 = pneg %p129
      $region18: #{tpu_custom_call.1} parent=5 // pred_check_branch
        %132 = sbr.rel (%p130) target = $region20
      $region19: #{tpu_custom_call.1} parent=5 // pred_region
        // Predicated region
        $region21: #{tpu_custom_call.1} parent=19 // pred_check
          %p133 = pneg %p32
        $region22: #{tpu_custom_call.1} parent=19 // pred_check_branch
          %135 = sbr.rel (%p133) target = $region24
        $region23: #{tpu_custom_call.1} parent=19 // pred_region
          %s136 = smul.u32 64, %s12
          %p137 = scmp.lt.s32.totalorder %s136, 127
          %s138 = scalar_select %p137, %s136, 127
          %s139 = smul.addr %s138, 8
          %s140 = scalar_lea.vmem %s0, %s139
          %s141 = smul.u32 64, %s12
        $region24: #{tpu_custom_call.1} parent=19 // pred_fallthru
          _
        // Predicated region
        $region25: #{tpu_custom_call.1} parent=19 // pred_check
          %p142 = pneg %p58
        $region26: #{tpu_custom_call.1} parent=19 // pred_check_branch
          %144 = sbr.rel (%p142) target = $region28
        $region27: #{tpu_custom_call.1} parent=19 // pred_region
          %s145 = smul.u32 64, %s12
          %p146 = scmp.lt.s32.totalorder %s145, 127
          %s147 = scalar_select %p146, %s145, 127
          %s148 = smul.addr %s147, 8
          %s149 = scalar_lea.vmem %s1, %s148
          %s150 = smul.u32 64, %s12
        $region28: #{tpu_custom_call.1} parent=19 // pred_fallthru
          _
      $region20: #{tpu_custom_call.1} parent=5 // pred_fallthru
        _
      %p151 = scmp.le.s32.totalorder 1, %s12
      %p152 = scmp.lt.s32.totalorder %s12, 3
      %p153 = pnand %p151, %p152
      %p154 = pneg %p153
      // Predicated region
      $region29: #{tpu_custom_call.1} parent=5 // pred_check
        _
      $region30: #{tpu_custom_call.1} parent=5 // pred_check_branch
        %156 = sbr.rel (%p153) target = $region32
      $region31: #{tpu_custom_call.1} parent=5 // pred_region
        %s157 = ssub.s32 %s12, 1
        %s158 = smul.u32 64, %s17
        %p159 = scmp.lt.s32.totalorder %s158, 127
        %s160 = scalar_select %p159, %s158, 127
        %s161 = smul.addr %s160, 8
        %s162 = scalar_lea.vmem %s0, %s161
        %p163 = pneg %p38
        %p164 = pneg %p35
        %s165 = smul.u32 64, %s17
        %p166 = scmp.lt.s32.totalorder %s165, 127
        %s167 = scalar_select %p166, %s165, 127
        %s168 = smul.addr %s167, 8
        %s169 = scalar_lea.vmem %s1, %s168
        %p170 = pneg %p64
        %p171 = pneg %p61
        %p172 = pneg %p85
        %p173 = pneg %p82
        %p174 = pneg %p111
        %p175 = pneg %p108
        %s176 = sand.u32 %s98, 1
        %s177 = scalar_lea.sflag [#allocation3], %s176
        %s178 = sand.u32 %s98, 1
        %s179 = smul.addr %s178, 1024
        %s180 = scalar_lea.vmem [#allocation2], %s179
        %s181 = smul.u32 64, %s17
        %p182 = scmp.lt.s32.totalorder %s181, 127
        %s183 = scalar_select %p182, %s181, 127
        %s184 = smul.addr %s183, 8
        %s185 = scalar_lea.vmem %s0, %s184
        %s186 = smul.u32 64, %s17
        %s187 = smul.u32 64, %s17
        %p188 = scmp.lt.s32.totalorder %s187, 127
        %s189 = scalar_select %p188, %s187, 127
        %s190 = smul.addr %s189, 8
        %s191 = scalar_lea.vmem %s1, %s190
        %s192 = smul.u32 64, %s17
        %s193 = smul.u32 64, %s17
        %v194 = vld [vmem:[%s185] sm:$0xff]
        %v195 = vld [vmem:[%s185 + $0x8] sm:$0xff]
        %v196 = vld [vmem:[%s185 + $0x10] sm:$0xff]
        %v197 = vld [vmem:[%s185 + $0x18] sm:$0xff]
        %v198 = vld [vmem:[%s185 + $0x20] sm:$0xff]
        %v199 = vld [vmem:[%s185 + $0x28] sm:$0xff]
        %v200 = vld [vmem:[%s185 + $0x30] sm:$0xff]
        %v201 = vld [vmem:[%s185 + $0x38] sm:$0xff]
        %v202 = vld [vmem:[%s185 + $0x40] sm:$0xff]
        %v203 = vld [vmem:[%s185 + $0x48] sm:$0xff]
        %v204 = vld [vmem:[%s185 + $0x50] sm:$0xff]
        %v205 = vld [vmem:[%s185 + $0x58] sm:$0xff]
        %v206 = vld [vmem:[%s185 + $0x60] sm:$0xff]
        %v207 = vld [vmem:[%s185 + $0x68] sm:$0xff]
        %v208 = vld [vmem:[%s185 + $0x70] sm:$0xff]
        %v209 = vld [vmem:[%s185 + $0x78] sm:$0xff]
        %v210 = vld [vmem:[%s185 + $0x80] sm:$0xff]
        %v211 = vld [vmem:[%s185 + $0x88] sm:$0xff]
        %v212 = vld [vmem:[%s185 + $0x90] sm:$0xff]
        %v213 = vld [vmem:[%s185 + $0x98] sm:$0xff]
        %v214 = vld [vmem:[%s185 + $0xa0] sm:$0xff]
        %v215 = vld [vmem:[%s185 + $0xa8] sm:$0xff]
        %v216 = vld [vmem:[%s185 + $0xb0] sm:$0xff]
        %v217 = vld [vmem:[%s185 + $0xb8] sm:$0xff]
        %v218 = vld [vmem:[%s185 + $0xc0] sm:$0xff]
        %v219 = vld [vmem:[%s185 + $0xc8] sm:$0xff]
        %v220 = vld [vmem:[%s185 + $0xd0] sm:$0xff]
        %v221 = vld [vmem:[%s185 + $0xd8] sm:$0xff]
        %v222 = vld [vmem:[%s185 + $0xe0] sm:$0xff]
        %v223 = vld [vmem:[%s185 + $0xe8] sm:$0xff]
        %v224 = vld [vmem:[%s185 + $0xf0] sm:$0xff]
        %v225 = vld [vmem:[%s185 + $0xf8] sm:$0xff]
        %v226 = vld [vmem:[%s185 + $0x100] sm:$0xff]
        %v227 = vld [vmem:[%s185 + $0x108] sm:$0xff]
        %v228 = vld [vmem:[%s185 + $0x110] sm:$0xff]
        %v229 = vld [vmem:[%s185 + $0x118] sm:$0xff]
        %v230 = vld [vmem:[%s185 + $0x120] sm:$0xff]
        %v231 = vld [vmem:[%s185 + $0x128] sm:$0xff]
        %v232 = vld [vmem:[%s185 + $0x130] sm:$0xff]
        %v233 = vld [vmem:[%s185 + $0x138] sm:$0xff]
        %v234 = vld [vmem:[%s185 + $0x140] sm:$0xff]
        %v235 = vld [vmem:[%s185 + $0x148] sm:$0xff]
        %v236 = vld [vmem:[%s185 + $0x150] sm:$0xff]
        %v237 = vld [vmem:[%s185 + $0x158] sm:$0xff]
        %v238 = vld [vmem:[%s185 + $0x160] sm:$0xff]
        %v239 = vld [vmem:[%s185 + $0x168] sm:$0xff]
        %v240 = vld [vmem:[%s185 + $0x170] sm:$0xff]
        %v241 = vld [vmem:[%s185 + $0x178] sm:$0xff]
        %v242 = vld [vmem:[%s185 + $0x180] sm:$0xff]
        %v243 = vld [vmem:[%s185 + $0x188] sm:$0xff]
        %v244 = vld [vmem:[%s185 + $0x190] sm:$0xff]
        %v245 = vld [vmem:[%s185 + $0x198] sm:$0xff]
        %v246 = vld [vmem:[%s185 + $0x1a0] sm:$0xff]
        %v247 = vld [vmem:[%s185 + $0x1a8] sm:$0xff]
        %v248 = vld [vmem:[%s185 + $0x1b0] sm:$0xff]
        %v249 = vld [vmem:[%s185 + $0x1b8] sm:$0xff]
        %v250 = vld [vmem:[%s185 + $0x1c0] sm:$0xff]
        %v251 = vld [vmem:[%s185 + $0x1c8] sm:$0xff]
        %v252 = vld [vmem:[%s185 + $0x1d0] sm:$0xff]
        %v253 = vld [vmem:[%s185 + $0x1d8] sm:$0xff]
        %v254 = vld [vmem:[%s185 + $0x1e0] sm:$0xff]
        %v255 = vld [vmem:[%s185 + $0x1e8] sm:$0xff]
        %v256 = vld [vmem:[%s185 + $0x1f0] sm:$0xff]
        %v257 = vld [vmem:[%s185 + $0x1f8] sm:$0xff]
        %v258 = vld [vmem:[%s191] sm:$0xff]
        %v259 = vld [vmem:[%s191 + $0x8] sm:$0xff]
        %v260 = vld [vmem:[%s191 + $0x10] sm:$0xff]
        %v261 = vld [vmem:[%s191 + $0x18] sm:$0xff]
        %v262 = vld [vmem:[%s191 + $0x20] sm:$0xff]
        %v263 = vld [vmem:[%s191 + $0x28] sm:$0xff]
        %v264 = vld [vmem:[%s191 + $0x30] sm:$0xff]
        %v265 = vld [vmem:[%s191 + $0x38] sm:$0xff]
        %v266 = vld [vmem:[%s191 + $0x40] sm:$0xff]
        %v267 = vld [vmem:[%s191 + $0x48] sm:$0xff]
        %v268 = vld [vmem:[%s191 + $0x50] sm:$0xff]
        %v269 = vld [vmem:[%s191 + $0x58] sm:$0xff]
        %v270 = vld [vmem:[%s191 + $0x60] sm:$0xff]
        %v271 = vld [vmem:[%s191 + $0x68] sm:$0xff]
        %v272 = vld [vmem:[%s191 + $0x70] sm:$0xff]
        %v273 = vld [vmem:[%s191 + $0x78] sm:$0xff]
        %v274 = vld [vmem:[%s191 + $0x80] sm:$0xff]
        %v275 = vld [vmem:[%s191 + $0x88] sm:$0xff]
        %v276 = vld [vmem:[%s191 + $0x90] sm:$0xff]
        %v277 = vld [vmem:[%s191 + $0x98] sm:$0xff]
        %v278 = vld [vmem:[%s191 + $0xa0] sm:$0xff]
        %v279 = vld [vmem:[%s191 + $0xa8] sm:$0xff]
        %v280 = vld [vmem:[%s191 + $0xb0] sm:$0xff]
        %v281 = vld [vmem:[%s191 + $0xb8] sm:$0xff]
        %v282 = vld [vmem:[%s191 + $0xc0] sm:$0xff]
        %v283 = vld [vmem:[%s191 + $0xc8] sm:$0xff]
        %v284 = vld [vmem:[%s191 + $0xd0] sm:$0xff]
        %v285 = vld [vmem:[%s191 + $0xd8] sm:$0xff]
        %v286 = vld [vmem:[%s191 + $0xe0] sm:$0xff]
        %v287 = vld [vmem:[%s191 + $0xe8] sm:$0xff]
        %v288 = vld [vmem:[%s191 + $0xf0] sm:$0xff]
        %v289 = vld [vmem:[%s191 + $0xf8] sm:$0xff]
        %v290 = vld [vmem:[%s191 + $0x100] sm:$0xff]
        %v291 = vld [vmem:[%s191 + $0x108] sm:$0xff]
        %v292 = vld [vmem:[%s191 + $0x110] sm:$0xff]
        %v293 = vld [vmem:[%s191 + $0x118] sm:$0xff]
        %v294 = vld [vmem:[%s191 + $0x120] sm:$0xff]
        %v295 = vld [vmem:[%s191 + $0x128] sm:$0xff]
        %v296 = vld [vmem:[%s191 + $0x130] sm:$0xff]
        %v297 = vld [vmem:[%s191 + $0x138] sm:$0xff]
        %v298 = vld [vmem:[%s191 + $0x140] sm:$0xff]
        %v299 = vld [vmem:[%s191 + $0x148] sm:$0xff]
        %v300 = vld [vmem:[%s191 + $0x150] sm:$0xff]
        %v301 = vld [vmem:[%s191 + $0x158] sm:$0xff]
        %v302 = vld [vmem:[%s191 + $0x160] sm:$0xff]
        %v303 = vld [vmem:[%s191 + $0x168] sm:$0xff]
        %v304 = vld [vmem:[%s191 + $0x170] sm:$0xff]
        %v305 = vld [vmem:[%s191 + $0x178] sm:$0xff]
        %v306 = vld [vmem:[%s191 + $0x180] sm:$0xff]
        %v307 = vld [vmem:[%s191 + $0x188] sm:$0xff]
        %v308 = vld [vmem:[%s191 + $0x190] sm:$0xff]
        %v309 = vld [vmem:[%s191 + $0x198] sm:$0xff]
        %v310 = vld [vmem:[%s191 + $0x1a0] sm:$0xff]
        %v311 = vld [vmem:[%s191 + $0x1a8] sm:$0xff]
        %v312 = vld [vmem:[%s191 + $0x1b0] sm:$0xff]
        %v313 = vld [vmem:[%s191 + $0x1b8] sm:$0xff]
        %v314 = vld [vmem:[%s191 + $0x1c0] sm:$0xff]
        %v315 = vld [vmem:[%s191 + $0x1c8] sm:$0xff]
        %v316 = vld [vmem:[%s191 + $0x1d0] sm:$0xff]
        %v317 = vld [vmem:[%s191 + $0x1d8] sm:$0xff]
        %v318 = vld [vmem:[%s191 + $0x1e0] sm:$0xff]
        %v319 = vld [vmem:[%s191 + $0x1e8] sm:$0xff]
        %v320 = vld [vmem:[%s191 + $0x1f0] sm:$0xff]
        %v321 = vld [vmem:[%s191 + $0x1f8] sm:$0xff]
        %v322 = vadd.s32 %v258, 128
        %v323 = vadd.s32 %v259, 128
        %v324 = vadd.s32 %v260, 128
        %v325 = vadd.s32 %v261, 128
        %v326 = vadd.s32 %v262, 128
        %v327 = vadd.s32 %v263, 128
        %v328 = vadd.s32 %v264, 128
        %v329 = vadd.s32 %v265, 128
        %v330 = vadd.s32 %v266, 128
        %v331 = vadd.s32 %v267, 128
        %v332 = vadd.s32 %v268, 128
        %v333 = vadd.s32 %v269, 128
        %v334 = vadd.s32 %v270, 128
        %v335 = vadd.s32 %v271, 128
        %v336 = vadd.s32 %v272, 128
        %v337 = vadd.s32 %v273, 128
        %v338 = vadd.s32 %v274, 128
        %v339 = vadd.s32 %v275, 128
        %v340 = vadd.s32 %v276, 128
        %v341 = vadd.s32 %v277, 128
        %v342 = vadd.s32 %v278, 128
        %v343 = vadd.s32 %v279, 128
        %v344 = vadd.s32 %v280, 128
        %v345 = vadd.s32 %v281, 128
        %v346 = vadd.s32 %v282, 128
        %v347 = vadd.s32 %v283, 128
        %v348 = vadd.s32 %v284, 128
        %v349 = vadd.s32 %v285, 128
        %v350 = vadd.s32 %v286, 128
        %v351 = vadd.s32 %v287, 128
        %v352 = vadd.s32 %v288, 128
        %v353 = vadd.s32 %v289, 128
        %v354 = vadd.s32 %v290, 128
        %v355 = vadd.s32 %v291, 128
        %v356 = vadd.s32 %v292, 128
        %v357 = vadd.s32 %v293, 128
        %v358 = vadd.s32 %v294, 128
        %v359 = vadd.s32 %v295, 128
        %v360 = vadd.s32 %v296, 128
        %v361 = vadd.s32 %v297, 128
        %v362 = vadd.s32 %v298, 128
        %v363 = vadd.s32 %v299, 128
        %v364 = vadd.s32 %v300, 128
        %v365 = vadd.s32 %v301, 128
        %v366 = vadd.s32 %v302, 128
        %v367 = vadd.s32 %v303, 128
        %v368 = vadd.s32 %v304, 128
        %v369 = vadd.s32 %v305, 128
        %v370 = vadd.s32 %v306, 128
        %v371 = vadd.s32 %v307, 128
        %v372 = vadd.s32 %v308, 128
        %v373 = vadd.s32 %v309, 128
        %v374 = vadd.s32 %v310, 128
        %v375 = vadd.s32 %v311, 128
        %v376 = vadd.s32 %v312, 128
        %v377 = vadd.s32 %v313, 128
        %v378 = vadd.s32 %v314, 128
        %v379 = vadd.s32 %v315, 128
        %v380 = vadd.s32 %v316, 128
        %v381 = vadd.s32 %v317, 128
        %v382 = vadd.s32 %v318, 128
        %v383 = vadd.s32 %v319, 128
        %v384 = vadd.s32 %v320, 128
        %v385 = vadd.s32 %v321, 128
        %v386 = vlaneseq
        %v387 = vand.u32 %v386, 127
        %v388 = vadd.s32 %v387, 128
        %389 = vset.pattern.permute.xlu0 0
        %390 = vperm.xlu0 %389, %v194
        %v391 = vpop.permute.xlu0 %390
        %392 = vset.pattern.permute.xlu0 0
        %393 = vperm.xlu0 %392, %v195
        %v394 = vpop.permute.xlu0 %393
        %395 = vset.pattern.permute.xlu0 0
        %396 = vperm.xlu0 %395, %v196
        %v397 = vpop.permute.xlu0 %396
        %398 = vset.pattern.permute.xlu0 0
        %399 = vperm.xlu0 %398, %v197
        %v400 = vpop.permute.xlu0 %399
        %401 = vset.pattern.permute.xlu0 0
        %402 = vperm.xlu0 %401, %v198
        %v403 = vpop.permute.xlu0 %402
        %404 = vset.pattern.permute.xlu0 0
        %405 = vperm.xlu0 %404, %v199
        %v406 = vpop.permute.xlu0 %405
        %407 = vset.pattern.permute.xlu0 0
        %408 = vperm.xlu0 %407, %v200
        %v409 = vpop.permute.xlu0 %408
        %410 = vset.pattern.permute.xlu0 0
        %411 = vperm.xlu0 %410, %v201
        %v412 = vpop.permute.xlu0 %411
        %413 = vset.pattern.permute.xlu0 0
        %414 = vperm.xlu0 %413, %v202
        %v415 = vpop.permute.xlu0 %414
        %416 = vset.pattern.permute.xlu0 0
        %417 = vperm.xlu0 %416, %v203
        %v418 = vpop.permute.xlu0 %417
        %419 = vset.pattern.permute.xlu0 0
        %420 = vperm.xlu0 %419, %v204
        %v421 = vpop.permute.xlu0 %420
        %422 = vset.pattern.permute.xlu0 0
        %423 = vperm.xlu0 %422, %v205
        %v424 = vpop.permute.xlu0 %423
        %425 = vset.pattern.permute.xlu0 0
        %426 = vperm.xlu0 %425, %v206
        %v427 = vpop.permute.xlu0 %426
        %428 = vset.pattern.permute.xlu0 0
        %429 = vperm.xlu0 %428, %v207
        %v430 = vpop.permute.xlu0 %429
        %431 = vset.pattern.permute.xlu0 0
        %432 = vperm.xlu0 %431, %v208
        %v433 = vpop.permute.xlu0 %432
        %434 = vset.pattern.permute.xlu0 0
        %435 = vperm.xlu0 %434, %v209
        %v436 = vpop.permute.xlu0 %435
        %437 = vset.pattern.permute.xlu0 0
        %438 = vperm.xlu0 %437, %v210
        %v439 = vpop.permute.xlu0 %438
        %440 = vset.pattern.permute.xlu0 0
        %441 = vperm.xlu0 %440, %v211
        %v442 = vpop.permute.xlu0 %441
        %443 = vset.pattern.permute.xlu0 0
        %444 = vperm.xlu0 %443, %v212
        %v445 = vpop.permute.xlu0 %444
        %446 = vset.pattern.permute.xlu0 0
        %447 = vperm.xlu0 %446, %v213
        %v448 = vpop.permute.xlu0 %447
        %449 = vset.pattern.permute.xlu0 0
        %450 = vperm.xlu0 %449, %v214
        %v451 = vpop.permute.xlu0 %450
        %452 = vset.pattern.permute.xlu0 0
        %453 = vperm.xlu0 %452, %v215
        %v454 = vpop.permute.xlu0 %453
        %455 = vset.pattern.permute.xlu0 0
        %456 = vperm.xlu0 %455, %v216
        %v457 = vpop.permute.xlu0 %456
        %458 = vset.pattern.permute.xlu0 0
        %459 = vperm.xlu0 %458, %v217
        %v460 = vpop.permute.xlu0 %459
        %461 = vset.pattern.permute.xlu0 0
        %462 = vperm.xlu0 %461, %v218
        %v463 = vpop.permute.xlu0 %462
        %464 = vset.pattern.permute.xlu0 0
        %465 = vperm.xlu0 %464, %v219
        %v466 = vpop.permute.xlu0 %465
        %467 = vset.pattern.permute.xlu0 0
        %468 = vperm.xlu0 %467, %v220
        %v469 = vpop.permute.xlu0 %468
        %470 = vset.pattern.permute.xlu0 0
        %471 = vperm.xlu0 %470, %v221
        %v472 = vpop.permute.xlu0 %471
        %473 = vset.pattern.permute.xlu0 0
        %474 = vperm.xlu0 %473, %v222
        %v475 = vpop.permute.xlu0 %474
        %476 = vset.pattern.permute.xlu0 0
        %477 = vperm.xlu0 %476, %v223
        %v478 = vpop.permute.xlu0 %477
        %479 = vset.pattern.permute.xlu0 0
        %480 = vperm.xlu0 %479, %v224
        %v481 = vpop.permute.xlu0 %480
        %482 = vset.pattern.permute.xlu0 0
        %483 = vperm.xlu0 %482, %v225
        %v484 = vpop.permute.xlu0 %483
        %485 = vset.pattern.permute.xlu0 0
        %486 = vperm.xlu0 %485, %v226
        %v487 = vpop.permute.xlu0 %486
        %488 = vset.pattern.permute.xlu0 0
        %489 = vperm.xlu0 %488, %v227
        %v490 = vpop.permute.xlu0 %489
        %491 = vset.pattern.permute.xlu0 0
        %492 = vperm.xlu0 %491, %v228
        %v493 = vpop.permute.xlu0 %492
        %494 = vset.pattern.permute.xlu0 0
        %495 = vperm.xlu0 %494, %v229
        %v496 = vpop.permute.xlu0 %495
        %497 = vset.pattern.permute.xlu0 0
        %498 = vperm.xlu0 %497, %v230
        %v499 = vpop.permute.xlu0 %498
        %500 = vset.pattern.permute.xlu0 0
        %501 = vperm.xlu0 %500, %v231
        %v502 = vpop.permute.xlu0 %501
        %503 = vset.pattern.permute.xlu0 0
        %504 = vperm.xlu0 %503, %v232
        %v505 = vpop.permute.xlu0 %504
        %506 = vset.pattern.permute.xlu0 0
        %507 = vperm.xlu0 %506, %v233
        %v508 = vpop.permute.xlu0 %507
        %509 = vset.pattern.permute.xlu0 0
        %510 = vperm.xlu0 %509, %v234
        %v511 = vpop.permute.xlu0 %510
        %512 = vset.pattern.permute.xlu0 0
        %513 = vperm.xlu0 %512, %v235
        %v514 = vpop.permute.xlu0 %513
        %515 = vset.pattern.permute.xlu0 0
        %516 = vperm.xlu0 %515, %v236
        %v517 = vpop.permute.xlu0 %516
        %518 = vset.pattern.permute.xlu0 0
        %519 = vperm.xlu0 %518, %v237
        %v520 = vpop.permute.xlu0 %519
        %521 = vset.pattern.permute.xlu0 0
        %522 = vperm.xlu0 %521, %v238
        %v523 = vpop.permute.xlu0 %522
        %524 = vset.pattern.permute.xlu0 0
        %525 = vperm.xlu0 %524, %v239
        %v526 = vpop.permute.xlu0 %525
        %527 = vset.pattern.permute.xlu0 0
        %528 = vperm.xlu0 %527, %v240
        %v529 = vpop.permute.xlu0 %528
        %530 = vset.pattern.permute.xlu0 0
        %531 = vperm.xlu0 %530, %v241
        %v532 = vpop.permute.xlu0 %531
        %533 = vset.pattern.permute.xlu0 0
        %534 = vperm.xlu0 %533, %v242
        %v535 = vpop.permute.xlu0 %534
        %536 = vset.pattern.permute.xlu0 0
        %537 = vperm.xlu0 %536, %v243
        %v538 = vpop.permute.xlu0 %537
        %539 = vset.pattern.permute.xlu0 0
        %540 = vperm.xlu0 %539, %v244
        %v541 = vpop.permute.xlu0 %540
        %542 = vset.pattern.permute.xlu0 0
        %543 = vperm.xlu0 %542, %v245
        %v544 = vpop.permute.xlu0 %543
        %545 = vset.pattern.permute.xlu0 0
        %546 = vperm.xlu0 %545, %v246
        %v547 = vpop.permute.xlu0 %546
        %548 = vset.pattern.permute.xlu0 0
        %549 = vperm.xlu0 %548, %v247
        %v550 = vpop.permute.xlu0 %549
        %551 = vset.pattern.permute.xlu0 0
        %552 = vperm.xlu0 %551, %v248
        %v553 = vpop.permute.xlu0 %552
        %554 = vset.pattern.permute.xlu0 0
        %555 = vperm.xlu0 %554, %v249
        %v556 = vpop.permute.xlu0 %555
        %557 = vset.pattern.permute.xlu0 0
        %558 = vperm.xlu0 %557, %v250
        %v559 = vpop.permute.xlu0 %558
        %560 = vset.pattern.permute.xlu0 0
        %561 = vperm.xlu0 %560, %v251
        %v562 = vpop.permute.xlu0 %561
        %563 = vset.pattern.permute.xlu0 0
        %564 = vperm.xlu0 %563, %v252
        %v565 = vpop.permute.xlu0 %564
        %566 = vset.pattern.permute.xlu0 0
        %567 = vperm.xlu0 %566, %v253
        %v568 = vpop.permute.xlu0 %567
        %569 = vset.pattern.permute.xlu0 0
        %570 = vperm.xlu0 %569, %v254
        %v571 = vpop.permute.xlu0 %570
        %572 = vset.pattern.permute.xlu0 0
        %573 = vperm.xlu0 %572, %v255
        %v574 = vpop.permute.xlu0 %573
        %575 = vset.pattern.permute.xlu0 0
        %576 = vperm.xlu0 %575, %v256
        %v577 = vpop.permute.xlu0 %576
        %578 = vset.pattern.permute.xlu0 0
        %579 = vperm.xlu0 %578, %v257
        %v580 = vpop.permute.xlu0 %579
        %vm581 = vcmp.eq.s32.totalorder %v387, %v391
        %vm582 = vcmp.eq.s32.totalorder %v388, %v391
        %vm583 = vcmp.eq.s32.totalorder %v387, %v394
        %vm584 = vcmp.eq.s32.totalorder %v388, %v394
        %vm585 = vcmp.eq.s32.totalorder %v387, %v397
        %vm586 = vcmp.eq.s32.totalorder %v388, %v397
        %vm587 = vcmp.eq.s32.totalorder %v387, %v400
        %vm588 = vcmp.eq.s32.totalorder %v388, %v400
        %vm589 = vcmp.eq.s32.totalorder %v387, %v403
        %vm590 = vcmp.eq.s32.totalorder %v388, %v403
        %vm591 = vcmp.eq.s32.totalorder %v387, %v406
        %vm592 = vcmp.eq.s32.totalorder %v388, %v406
        %vm593 = vcmp.eq.s32.totalorder %v387, %v409
        %vm594 = vcmp.eq.s32.totalorder %v388, %v409
        %vm595 = vcmp.eq.s32.totalorder %v387, %v412
        %vm596 = vcmp.eq.s32.totalorder %v388, %v412
        %vm597 = vcmp.eq.s32.totalorder %v387, %v415
        %vm598 = vcmp.eq.s32.totalorder %v388, %v415
        %vm599 = vcmp.eq.s32.totalorder %v387, %v418
        %vm600 = vcmp.eq.s32.totalorder %v388, %v418
        %vm601 = vcmp.eq.s32.totalorder %v387, %v421
        %vm602 = vcmp.eq.s32.totalorder %v388, %v421
        %vm603 = vcmp.eq.s32.totalorder %v387, %v424
        %vm604 = vcmp.eq.s32.totalorder %v388, %v424
        %vm605 = vcmp.eq.s32.totalorder %v387, %v427
        %vm606 = vcmp.eq.s32.totalorder %v388, %v427
        %vm607 = vcmp.eq.s32.totalorder %v387, %v430
        %vm608 = vcmp.eq.s32.totalorder %v388, %v430
        %vm609 = vcmp.eq.s32.totalorder %v387, %v433
        %vm610 = vcmp.eq.s32.totalorder %v388, %v433
        %vm611 = vcmp.eq.s32.totalorder %v387, %v436
        %vm612 = vcmp.eq.s32.totalorder %v388, %v436
        %vm613 = vcmp.eq.s32.totalorder %v387, %v439
        %vm614 = vcmp.eq.s32.totalorder %v388, %v439
        %vm615 = vcmp.eq.s32.totalorder %v387, %v442
        %vm616 = vcmp.eq.s32.totalorder %v388, %v442
        %vm617 = vcmp.eq.s32.totalorder %v387, %v445
        %vm618 = vcmp.eq.s32.totalorder %v388, %v445
        %vm619 = vcmp.eq.s32.totalorder %v387, %v448
        %vm620 = vcmp.eq.s32.totalorder %v388, %v448
        %vm621 = vcmp.eq.s32.totalorder %v387, %v451
        %vm622 = vcmp.eq.s32.totalorder %v388, %v451
        %vm623 = vcmp.eq.s32.totalorder %v387, %v454
        %vm624 = vcmp.eq.s32.totalorder %v388, %v454
        %vm625 = vcmp.eq.s32.totalorder %v387, %v457
        %vm626 = vcmp.eq.s32.totalorder %v388, %v457
        %vm627 = vcmp.eq.s32.totalorder %v387, %v460
        %vm628 = vcmp.eq.s32.totalorder %v388, %v460
        %vm629 = vcmp.eq.s32.totalorder %v387, %v463
        %vm630 = vcmp.eq.s32.totalorder %v388, %v463
        %vm631 = vcmp.eq.s32.totalorder %v387, %v466
        %vm632 = vcmp.eq.s32.totalorder %v388, %v466
        %vm633 = vcmp.eq.s32.totalorder %v387, %v469
        %vm634 = vcmp.eq.s32.totalorder %v388, %v469
        %vm635 = vcmp.eq.s32.totalorder %v387, %v472
        %vm636 = vcmp.eq.s32.totalorder %v388, %v472
        %vm637 = vcmp.eq.s32.totalorder %v387, %v475
        %vm638 = vcmp.eq.s32.totalorder %v388, %v475
        %vm639 = vcmp.eq.s32.totalorder %v387, %v478
        %vm640 = vcmp.eq.s32.totalorder %v388, %v478
        %vm641 = vcmp.eq.s32.totalorder %v387, %v481
        %vm642 = vcmp.eq.s32.totalorder %v388, %v481
        %vm643 = vcmp.eq.s32.totalorder %v387, %v484
        %vm644 = vcmp.eq.s32.totalorder %v388, %v484
        %vm645 = vcmp.eq.s32.totalorder %v387, %v487
        %vm646 = vcmp.eq.s32.totalorder %v388, %v487
        %vm647 = vcmp.eq.s32.totalorder %v387, %v490
        %vm648 = vcmp.eq.s32.totalorder %v388, %v490
        %vm649 = vcmp.eq.s32.totalorder %v387, %v493
        %vm650 = vcmp.eq.s32.totalorder %v388, %v493
        %vm651 = vcmp.eq.s32.totalorder %v387, %v496
        %vm652 = vcmp.eq.s32.totalorder %v388, %v496
        %vm653 = vcmp.eq.s32.totalorder %v387, %v499
        %vm654 = vcmp.eq.s32.totalorder %v388, %v499
        %vm655 = vcmp.eq.s32.totalorder %v387, %v502
        %vm656 = vcmp.eq.s32.totalorder %v388, %v502
        %vm657 = vcmp.eq.s32.totalorder %v387, %v505
        %vm658 = vcmp.eq.s32.totalorder %v388, %v505
        %vm659 = vcmp.eq.s32.totalorder %v387, %v508
        %vm660 = vcmp.eq.s32.totalorder %v388, %v508
        %vm661 = vcmp.eq.s32.totalorder %v387, %v511
        %vm662 = vcmp.eq.s32.totalorder %v388, %v511
        %vm663 = vcmp.eq.s32.totalorder %v387, %v514
        %vm664 = vcmp.eq.s32.totalorder %v388, %v514
        %vm665 = vcmp.eq.s32.totalorder %v387, %v517
        %vm666 = vcmp.eq.s32.totalorder %v388, %v517
        %vm667 = vcmp.eq.s32.totalorder %v387, %v520
        %vm668 = vcmp.eq.s32.totalorder %v388, %v520
        %vm669 = vcmp.eq.s32.totalorder %v387, %v523
        %vm670 = vcmp.eq.s32.totalorder %v388, %v523
        %vm671 = vcmp.eq.s32.totalorder %v387, %v526
        %vm672 = vcmp.eq.s32.totalorder %v388, %v526
        %vm673 = vcmp.eq.s32.totalorder %v387, %v529
        %vm674 = vcmp.eq.s32.totalorder %v388, %v529
        %vm675 = vcmp.eq.s32.totalorder %v387, %v532
        %vm676 = vcmp.eq.s32.totalorder %v388, %v532
        %vm677 = vcmp.eq.s32.totalorder %v387, %v535
        %vm678 = vcmp.eq.s32.totalorder %v388, %v535
        %vm679 = vcmp.eq.s32.totalorder %v387, %v538
        %vm680 = vcmp.eq.s32.totalorder %v388, %v538
        %vm681 = vcmp.eq.s32.totalorder %v387, %v541
        %vm682 = vcmp.eq.s32.totalorder %v388, %v541
        %vm683 = vcmp.eq.s32.totalorder %v387, %v544
        %vm684 = vcmp.eq.s32.totalorder %v388, %v544
        %vm685 = vcmp.eq.s32.totalorder %v387, %v547
        %vm686 = vcmp.eq.s32.totalorder %v388, %v547
        %vm687 = vcmp.eq.s32.totalorder %v387, %v550
        %vm688 = vcmp.eq.s32.totalorder %v388, %v550
        %vm689 = vcmp.eq.s32.totalorder %v387, %v553
        %vm690 = vcmp.eq.s32.totalorder %v388, %v553
        %vm691 = vcmp.eq.s32.totalorder %v387, %v556
        %vm692 = vcmp.eq.s32.totalorder %v388, %v556
        %vm693 = vcmp.eq.s32.totalorder %v387, %v559
        %vm694 = vcmp.eq.s32.totalorder %v388, %v559
        %vm695 = vcmp.eq.s32.totalorder %v387, %v562
        %vm696 = vcmp.eq.s32.totalorder %v388, %v562
        %vm697 = vcmp.eq.s32.totalorder %v387, %v565
        %vm698 = vcmp.eq.s32.totalorder %v388, %v565
        %vm699 = vcmp.eq.s32.totalorder %v387, %v568
        %vm700 = vcmp.eq.s32.totalorder %v388, %v568
        %vm701 = vcmp.eq.s32.totalorder %v387, %v571
        %vm702 = vcmp.eq.s32.totalorder %v388, %v571
        %vm703 = vcmp.eq.s32.totalorder %v387, %v574
        %vm704 = vcmp.eq.s32.totalorder %v388, %v574
        %vm705 = vcmp.eq.s32.totalorder %v387, %v577
        %vm706 = vcmp.eq.s32.totalorder %v388, %v577
        %vm707 = vcmp.eq.s32.totalorder %v387, %v580
        %vm708 = vcmp.eq.s32.totalorder %v388, %v580
        %709 = vset.pattern.permute.xlu0 0
        %710 = vperm.xlu0 %709, %v322
        %v711 = vpop.permute.xlu0 %710
        %712 = vset.pattern.permute.xlu0 0
        %713 = vperm.xlu0 %712, %v323
        %v714 = vpop.permute.xlu0 %713
        %715 = vset.pattern.permute.xlu0 0
        %716 = vperm.xlu0 %715, %v324
        %v717 = vpop.permute.xlu0 %716
        %718 = vset.pattern.permute.xlu0 0
        %719 = vperm.xlu0 %718, %v325
        %v720 = vpop.permute.xlu0 %719
        %721 = vset.pattern.permute.xlu0 0
        %722 = vperm.xlu0 %721, %v326
        %v723 = vpop.permute.xlu0 %722
        %724 = vset.pattern.permute.xlu0 0
        %725 = vperm.xlu0 %724, %v327
        %v726 = vpop.permute.xlu0 %725
        %727 = vset.pattern.permute.xlu0 0
        %728 = vperm.xlu0 %727, %v328
        %v729 = vpop.permute.xlu0 %728
        %730 = vset.pattern.permute.xlu0 0
        %731 = vperm.xlu0 %730, %v329
        %v732 = vpop.permute.xlu0 %731
        %733 = vset.pattern.permute.xlu0 0
        %734 = vperm.xlu0 %733, %v330
        %v735 = vpop.permute.xlu0 %734
        %736 = vset.pattern.permute.xlu0 0
        %737 = vperm.xlu0 %736, %v331
        %v738 = vpop.permute.xlu0 %737
        %739 = vset.pattern.permute.xlu0 0
        %740 = vperm.xlu0 %739, %v332
        %v741 = vpop.permute.xlu0 %740
        %742 = vset.pattern.permute.xlu0 0
        %743 = vperm.xlu0 %742, %v333
        %v744 = vpop.permute.xlu0 %743
        %745 = vset.pattern.permute.xlu0 0
        %746 = vperm.xlu0 %745, %v334
        %v747 = vpop.permute.xlu0 %746
        %748 = vset.pattern.permute.xlu0 0
        %749 = vperm.xlu0 %748, %v335
        %v750 = vpop.permute.xlu0 %749
        %751 = vset.pattern.permute.xlu0 0
        %752 = vperm.xlu0 %751, %v336
        %v753 = vpop.permute.xlu0 %752
        %754 = vset.pattern.permute.xlu0 0
        %755 = vperm.xlu0 %754, %v337
        %v756 = vpop.permute.xlu0 %755
        %757 = vset.pattern.permute.xlu0 0
        %758 = vperm.xlu0 %757, %v338
        %v759 = vpop.permute.xlu0 %758
        %760 = vset.pattern.permute.xlu0 0
        %761 = vperm.xlu0 %760, %v339
        %v762 = vpop.permute.xlu0 %761
        %763 = vset.pattern.permute.xlu0 0
        %764 = vperm.xlu0 %763, %v340
        %v765 = vpop.permute.xlu0 %764
        %766 = vset.pattern.permute.xlu0 0
        %767 = vperm.xlu0 %766, %v341
        %v768 = vpop.permute.xlu0 %767
        %769 = vset.pattern.permute.xlu0 0
        %770 = vperm.xlu0 %769, %v342
        %v771 = vpop.permute.xlu0 %770
        %772 = vset.pattern.permute.xlu0 0
        %773 = vperm.xlu0 %772, %v343
        %v774 = vpop.permute.xlu0 %773
        %775 = vset.pattern.permute.xlu0 0
        %776 = vperm.xlu0 %775, %v344
        %v777 = vpop.permute.xlu0 %776
        %778 = vset.pattern.permute.xlu0 0
        %779 = vperm.xlu0 %778, %v345
        %v780 = vpop.permute.xlu0 %779
        %781 = vset.pattern.permute.xlu0 0
        %782 = vperm.xlu0 %781, %v346
        %v783 = vpop.permute.xlu0 %782
        %784 = vset.pattern.permute.xlu0 0
        %785 = vperm.xlu0 %784, %v347
        %v786 = vpop.permute.xlu0 %785
        %787 = vset.pattern.permute.xlu0 0
        %788 = vperm.xlu0 %787, %v348
        %v789 = vpop.permute.xlu0 %788
        %790 = vset.pattern.permute.xlu0 0
        %791 = vperm.xlu0 %790, %v349
        %v792 = vpop.permute.xlu0 %791
        %793 = vset.pattern.permute.xlu0 0
        %794 = vperm.xlu0 %793, %v350
        %v795 = vpop.permute.xlu0 %794
        %796 = vset.pattern.permute.xlu0 0
        %797 = vperm.xlu0 %796, %v351
        %v798 = vpop.permute.xlu0 %797
        %799 = vset.pattern.permute.xlu0 0
        %800 = vperm.xlu0 %799, %v352
        %v801 = vpop.permute.xlu0 %800
        %802 = vset.pattern.permute.xlu0 0
        %803 = vperm.xlu0 %802, %v353
        %v804 = vpop.permute.xlu0 %803
        %805 = vset.pattern.permute.xlu0 0
        %806 = vperm.xlu0 %805, %v354
        %v807 = vpop.permute.xlu0 %806
        %808 = vset.pattern.permute.xlu0 0
        %809 = vperm.xlu0 %808, %v355
        %v810 = vpop.permute.xlu0 %809
        %811 = vset.pattern.permute.xlu0 0
        %812 = vperm.xlu0 %811, %v356
        %v813 = vpop.permute.xlu0 %812
        %814 = vset.pattern.permute.xlu0 0
        %815 = vperm.xlu0 %814, %v357
        %v816 = vpop.permute.xlu0 %815
        %817 = vset.pattern.permute.xlu0 0
        %818 = vperm.xlu0 %817, %v358
        %v819 = vpop.permute.xlu0 %818
        %820 = vset.pattern.permute.xlu0 0
        %821 = vperm.xlu0 %820, %v359
        %v822 = vpop.permute.xlu0 %821
        %823 = vset.pattern.permute.xlu0 0
        %824 = vperm.xlu0 %823, %v360
        %v825 = vpop.permute.xlu0 %824
        %826 = vset.pattern.permute.xlu0 0
        %827 = vperm.xlu0 %826, %v361
        %v828 = vpop.permute.xlu0 %827
        %829 = vset.pattern.permute.xlu0 0
        %830 = vperm.xlu0 %829, %v362
        %v831 = vpop.permute.xlu0 %830
        %832 = vset.pattern.permute.xlu0 0
        %833 = vperm.xlu0 %832, %v363
        %v834 = vpop.permute.xlu0 %833
        %835 = vset.pattern.permute.xlu0 0
        %836 = vperm.xlu0 %835, %v364
        %v837 = vpop.permute.xlu0 %836
        %838 = vset.pattern.permute.xlu0 0
        %839 = vperm.xlu0 %838, %v365
        %v840 = vpop.permute.xlu0 %839
        %841 = vset.pattern.permute.xlu0 0
        %842 = vperm.xlu0 %841, %v366
        %v843 = vpop.permute.xlu0 %842
        %844 = vset.pattern.permute.xlu0 0
        %845 = vperm.xlu0 %844, %v367
        %v846 = vpop.permute.xlu0 %845
        %847 = vset.pattern.permute.xlu0 0
        %848 = vperm.xlu0 %847, %v368
        %v849 = vpop.permute.xlu0 %848
        %850 = vset.pattern.permute.xlu0 0
        %851 = vperm.xlu0 %850, %v369
        %v852 = vpop.permute.xlu0 %851
        %853 = vset.pattern.permute.xlu0 0
        %854 = vperm.xlu0 %853, %v370
        %v855 = vpop.permute.xlu0 %854
        %856 = vset.pattern.permute.xlu0 0
        %857 = vperm.xlu0 %856, %v371
        %v858 = vpop.permute.xlu0 %857
        %859 = vset.pattern.permute.xlu0 0
        %860 = vperm.xlu0 %859, %v372
        %v861 = vpop.permute.xlu0 %860
        %862 = vset.pattern.permute.xlu0 0
        %863 = vperm.xlu0 %862, %v373
        %v864 = vpop.permute.xlu0 %863
        %865 = vset.pattern.permute.xlu0 0
        %866 = vperm.xlu0 %865, %v374
        %v867 = vpop.permute.xlu0 %866
        %868 = vset.pattern.permute.xlu0 0
        %869 = vperm.xlu0 %868, %v375
        %v870 = vpop.permute.xlu0 %869
        %871 = vset.pattern.permute.xlu0 0
        %872 = vperm.xlu0 %871, %v376
        %v873 = vpop.permute.xlu0 %872
        %874 = vset.pattern.permute.xlu0 0
        %875 = vperm.xlu0 %874, %v377
        %v876 = vpop.permute.xlu0 %875
        %877 = vset.pattern.permute.xlu0 0
        %878 = vperm.xlu0 %877, %v378
        %v879 = vpop.permute.xlu0 %878
        %880 = vset.pattern.permute.xlu0 0
        %881 = vperm.xlu0 %880, %v379
        %v882 = vpop.permute.xlu0 %881
        %883 = vset.pattern.permute.xlu0 0
        %884 = vperm.xlu0 %883, %v380
        %v885 = vpop.permute.xlu0 %884
        %886 = vset.pattern.permute.xlu0 0
        %887 = vperm.xlu0 %886, %v381
        %v888 = vpop.permute.xlu0 %887
        %889 = vset.pattern.permute.xlu0 0
        %890 = vperm.xlu0 %889, %v382
        %v891 = vpop.permute.xlu0 %890
        %892 = vset.pattern.permute.xlu0 0
        %893 = vperm.xlu0 %892, %v383
        %v894 = vpop.permute.xlu0 %893
        %895 = vset.pattern.permute.xlu0 0
        %896 = vperm.xlu0 %895, %v384
        %v897 = vpop.permute.xlu0 %896
        %898 = vset.pattern.permute.xlu0 0
        %899 = vperm.xlu0 %898, %v385
        %v900 = vpop.permute.xlu0 %899
        %vm901 = vcmp.eq.s32.totalorder %v387, %v711
        %vm902 = vcmp.eq.s32.totalorder %v388, %v711
        %vm903 = vcmp.eq.s32.totalorder %v387, %v714
        %vm904 = vcmp.eq.s32.totalorder %v388, %v714
        %vm905 = vcmp.eq.s32.totalorder %v387, %v717
        %vm906 = vcmp.eq.s32.totalorder %v388, %v717
        %vm907 = vcmp.eq.s32.totalorder %v387, %v720
        %vm908 = vcmp.eq.s32.totalorder %v388, %v720
        %vm909 = vcmp.eq.s32.totalorder %v387, %v723
        %vm910 = vcmp.eq.s32.totalorder %v388, %v723
        %vm911 = vcmp.eq.s32.totalorder %v387, %v726
        %vm912 = vcmp.eq.s32.totalorder %v388, %v726
        %vm913 = vcmp.eq.s32.totalorder %v387, %v729
        %vm914 = vcmp.eq.s32.totalorder %v388, %v729
        %vm915 = vcmp.eq.s32.totalorder %v387, %v732
        %vm916 = vcmp.eq.s32.totalorder %v388, %v732
        %vm917 = vcmp.eq.s32.totalorder %v387, %v735
        %vm918 = vcmp.eq.s32.totalorder %v388, %v735
        %vm919 = vcmp.eq.s32.totalorder %v387, %v738
        %vm920 = vcmp.eq.s32.totalorder %v388, %v738
        %vm921 = vcmp.eq.s32.totalorder %v387, %v741
        %vm922 = vcmp.eq.s32.totalorder %v388, %v741
        %vm923 = vcmp.eq.s32.totalorder %v387, %v744
        %vm924 = vcmp.eq.s32.totalorder %v388, %v744
        %vm925 = vcmp.eq.s32.totalorder %v387, %v747
        %vm926 = vcmp.eq.s32.totalorder %v388, %v747
        %vm927 = vcmp.eq.s32.totalorder %v387, %v750
        %vm928 = vcmp.eq.s32.totalorder %v388, %v750
        %vm929 = vcmp.eq.s32.totalorder %v387, %v753
        %vm930 = vcmp.eq.s32.totalorder %v388, %v753
        %vm931 = vcmp.eq.s32.totalorder %v387, %v756
        %vm932 = vcmp.eq.s32.totalorder %v388, %v756
        %vm933 = vcmp.eq.s32.totalorder %v387, %v759
        %vm934 = vcmp.eq.s32.totalorder %v388, %v759
        %vm935 = vcmp.eq.s32.totalorder %v387, %v762
        %vm936 = vcmp.eq.s32.totalorder %v388, %v762
        %vm937 = vcmp.eq.s32.totalorder %v387, %v765
        %vm938 = vcmp.eq.s32.totalorder %v388, %v765
        %vm939 = vcmp.eq.s32.totalorder %v387, %v768
        %vm940 = vcmp.eq.s32.totalorder %v388, %v768
        %vm941 = vcmp.eq.s32.totalorder %v387, %v771
        %vm942 = vcmp.eq.s32.totalorder %v388, %v771
        %vm943 = vcmp.eq.s32.totalorder %v387, %v774
        %vm944 = vcmp.eq.s32.totalorder %v388, %v774
        %vm945 = vcmp.eq.s32.totalorder %v387, %v777
        %vm946 = vcmp.eq.s32.totalorder %v388, %v777
        %vm947 = vcmp.eq.s32.totalorder %v387, %v780
        %vm948 = vcmp.eq.s32.totalorder %v388, %v780
        %vm949 = vcmp.eq.s32.totalorder %v387, %v783
        %vm950 = vcmp.eq.s32.totalorder %v388, %v783
        %vm951 = vcmp.eq.s32.totalorder %v387, %v786
        %vm952 = vcmp.eq.s32.totalorder %v388, %v786
        %vm953 = vcmp.eq.s32.totalorder %v387, %v789
        %vm954 = vcmp.eq.s32.totalorder %v388, %v789
        %vm955 = vcmp.eq.s32.totalorder %v387, %v792
        %vm956 = vcmp.eq.s32.totalorder %v388, %v792
        %vm957 = vcmp.eq.s32.totalorder %v387, %v795
        %vm958 = vcmp.eq.s32.totalorder %v388, %v795
        %vm959 = vcmp.eq.s32.totalorder %v387, %v798
        %vm960 = vcmp.eq.s32.totalorder %v388, %v798
        %vm961 = vcmp.eq.s32.totalorder %v387, %v801
        %vm962 = vcmp.eq.s32.totalorder %v388, %v801
        %vm963 = vcmp.eq.s32.totalorder %v387, %v804
        %vm964 = vcmp.eq.s32.totalorder %v388, %v804
        %vm965 = vcmp.eq.s32.totalorder %v387, %v807
        %vm966 = vcmp.eq.s32.totalorder %v388, %v807
        %vm967 = vcmp.eq.s32.totalorder %v387, %v810
        %vm968 = vcmp.eq.s32.totalorder %v388, %v810
        %vm969 = vcmp.eq.s32.totalorder %v387, %v813
        %vm970 = vcmp.eq.s32.totalorder %v388, %v813
        %vm971 = vcmp.eq.s32.totalorder %v387, %v816
        %vm972 = vcmp.eq.s32.totalorder %v388, %v816
        %vm973 = vcmp.eq.s32.totalorder %v387, %v819
        %vm974 = vcmp.eq.s32.totalorder %v388, %v819
        %vm975 = vcmp.eq.s32.totalorder %v387, %v822
        %vm976 = vcmp.eq.s32.totalorder %v388, %v822
        %vm977 = vcmp.eq.s32.totalorder %v387, %v825
        %vm978 = vcmp.eq.s32.totalorder %v388, %v825
        %vm979 = vcmp.eq.s32.totalorder %v387, %v828
        %vm980 = vcmp.eq.s32.totalorder %v388, %v828
        %vm981 = vcmp.eq.s32.totalorder %v387, %v831
        %vm982 = vcmp.eq.s32.totalorder %v388, %v831
        %vm983 = vcmp.eq.s32.totalorder %v387, %v834
        %vm984 = vcmp.eq.s32.totalorder %v388, %v834
        %vm985 = vcmp.eq.s32.totalorder %v387, %v837
        %vm986 = vcmp.eq.s32.totalorder %v388, %v837
        %vm987 = vcmp.eq.s32.totalorder %v387, %v840
        %vm988 = vcmp.eq.s32.totalorder %v388, %v840
        %vm989 = vcmp.eq.s32.totalorder %v387, %v843
        %vm990 = vcmp.eq.s32.totalorder %v388, %v843
        %vm991 = vcmp.eq.s32.totalorder %v387, %v846
        %vm992 = vcmp.eq.s32.totalorder %v388, %v846
        %vm993 = vcmp.eq.s32.totalorder %v387, %v849
        %vm994 = vcmp.eq.s32.totalorder %v388, %v849
        %vm995 = vcmp.eq.s32.totalorder %v387, %v852
        %vm996 = vcmp.eq.s32.totalorder %v388, %v852
        %vm997 = vcmp.eq.s32.totalorder %v387, %v855
        %vm998 = vcmp.eq.s32.totalorder %v388, %v855
        %vm999 = vcmp.eq.s32.totalorder %v387, %v858
        %vm1000 = vcmp.eq.s32.totalorder %v388, %v858
        %vm1001 = vcmp.eq.s32.totalorder %v387, %v861
        %vm1002 = vcmp.eq.s32.totalorder %v388, %v861
        %vm1003 = vcmp.eq.s32.totalorder %v387, %v864
        %vm1004 = vcmp.eq.s32.totalorder %v388, %v864
        %vm1005 = vcmp.eq.s32.totalorder %v387, %v867
        %vm1006 = vcmp.eq.s32.totalorder %v388, %v867
        %vm1007 = vcmp.eq.s32.totalorder %v387, %v870
        %vm1008 = vcmp.eq.s32.totalorder %v388, %v870
        %vm1009 = vcmp.eq.s32.totalorder %v387, %v873
        %vm1010 = vcmp.eq.s32.totalorder %v388, %v873
        %vm1011 = vcmp.eq.s32.totalorder %v387, %v876
        %vm1012 = vcmp.eq.s32.totalorder %v388, %v876
        %vm1013 = vcmp.eq.s32.totalorder %v387, %v879
        %vm1014 = vcmp.eq.s32.totalorder %v388, %v879
        %vm1015 = vcmp.eq.s32.totalorder %v387, %v882
        %vm1016 = vcmp.eq.s32.totalorder %v388, %v882
        %vm1017 = vcmp.eq.s32.totalorder %v387, %v885
        %vm1018 = vcmp.eq.s32.totalorder %v388, %v885
        %vm1019 = vcmp.eq.s32.totalorder %v387, %v888
        %vm1020 = vcmp.eq.s32.totalorder %v388, %v888
        %vm1021 = vcmp.eq.s32.totalorder %v387, %v891
        %vm1022 = vcmp.eq.s32.totalorder %v388, %v891
        %vm1023 = vcmp.eq.s32.totalorder %v387, %v894
        %vm1024 = vcmp.eq.s32.totalorder %v388, %v894
        %vm1025 = vcmp.eq.s32.totalorder %v387, %v897
        %vm1026 = vcmp.eq.s32.totalorder %v388, %v897
        %vm1027 = vcmp.eq.s32.totalorder %v387, %v900
        %vm1028 = vcmp.eq.s32.totalorder %v388, %v900
        %vm1029 = vmor %vm581, %vm901
        %vm1030 = vmor %vm582, %vm902
        %vm1031 = vmor %vm583, %vm903
        %vm1032 = vmor %vm584, %vm904
        %vm1033 = vmor %vm585, %vm905
        %vm1034 = vmor %vm586, %vm906
        %vm1035 = vmor %vm587, %vm907
        %vm1036 = vmor %vm588, %vm908
        %vm1037 = vmor %vm589, %vm909
        %vm1038 = vmor %vm590, %vm910
        %vm1039 = vmor %vm591, %vm911
        %vm1040 = vmor %vm592, %vm912
        %vm1041 = vmor %vm593, %vm913
        %vm1042 = vmor %vm594, %vm914
        %vm1043 = vmor %vm595, %vm915
        %vm1044 = vmor %vm596, %vm916
        %vm1045 = vmor %vm597, %vm917
        %vm1046 = vmor %vm598, %vm918
        %vm1047 = vmor %vm599, %vm919
        %vm1048 = vmor %vm600, %vm920
        %vm1049 = vmor %vm601, %vm921
        %vm1050 = vmor %vm602, %vm922
        %vm1051 = vmor %vm603, %vm923
        %vm1052 = vmor %vm604, %vm924
        %vm1053 = vmor %vm605, %vm925
        %vm1054 = vmor %vm606, %vm926
        %vm1055 = vmor %vm607, %vm927
        %vm1056 = vmor %vm608, %vm928
        %vm1057 = vmor %vm609, %vm929
        %vm1058 = vmor %vm610, %vm930
        %vm1059 = vmor %vm611, %vm931
        %vm1060 = vmor %vm612, %vm932
        %vm1061 = vmor %vm613, %vm933
        %vm1062 = vmor %vm614, %vm934
        %vm1063 = vmor %vm615, %vm935
        %vm1064 = vmor %vm616, %vm936
        %vm1065 = vmor %vm617, %vm937
        %vm1066 = vmor %vm618, %vm938
        %vm1067 = vmor %vm619, %vm939
        %vm1068 = vmor %vm620, %vm940
        %vm1069 = vmor %vm621, %vm941
        %vm1070 = vmor %vm622, %vm942
        %vm1071 = vmor %vm623, %vm943
        %vm1072 = vmor %vm624, %vm944
        %vm1073 = vmor %vm625, %vm945
        %vm1074 = vmor %vm626, %vm946
        %vm1075 = vmor %vm627, %vm947
        %vm1076 = vmor %vm628, %vm948
        %vm1077 = vmor %vm629, %vm949
        %vm1078 = vmor %vm630, %vm950
        %vm1079 = vmor %vm631, %vm951
        %vm1080 = vmor %vm632, %vm952
        %vm1081 = vmor %vm633, %vm953
        %vm1082 = vmor %vm634, %vm954
        %vm1083 = vmor %vm635, %vm955
        %vm1084 = vmor %vm636, %vm956
        %vm1085 = vmor %vm637, %vm957
        %vm1086 = vmor %vm638, %vm958
        %vm1087 = vmor %vm639, %vm959
        %vm1088 = vmor %vm640, %vm960
        %vm1089 = vmor %vm641, %vm961
        %vm1090 = vmor %vm642, %vm962
        %vm1091 = vmor %vm643, %vm963
        %vm1092 = vmor %vm644, %vm964
        %vm1093 = vmor %vm645, %vm965
        %vm1094 = vmor %vm646, %vm966
        %vm1095 = vmor %vm647, %vm967
        %vm1096 = vmor %vm648, %vm968
        %vm1097 = vmor %vm649, %vm969
        %vm1098 = vmor %vm650, %vm970
        %vm1099 = vmor %vm651, %vm971
        %vm1100 = vmor %vm652, %vm972
        %vm1101 = vmor %vm653, %vm973
        %vm1102 = vmor %vm654, %vm974
        %vm1103 = vmor %vm655, %vm975
        %vm1104 = vmor %vm656, %vm976
        %vm1105 = vmor %vm657, %vm977
        %vm1106 = vmor %vm658, %vm978
        %vm1107 = vmor %vm659, %vm979
        %vm1108 = vmor %vm660, %vm980
        %vm1109 = vmor %vm661, %vm981
        %vm1110 = vmor %vm662, %vm982
        %vm1111 = vmor %vm663, %vm983
        %vm1112 = vmor %vm664, %vm984
        %vm1113 = vmor %vm665, %vm985
        %vm1114 = vmor %vm666, %vm986
        %vm1115 = vmor %vm667, %vm987
        %vm1116 = vmor %vm668, %vm988
        %vm1117 = vmor %vm669, %vm989
        %vm1118 = vmor %vm670, %vm990
        %vm1119 = vmor %vm671, %vm991
        %vm1120 = vmor %vm672, %vm992
        %vm1121 = vmor %vm673, %vm993
        %vm1122 = vmor %vm674, %vm994
        %vm1123 = vmor %vm675, %vm995
        %vm1124 = vmor %vm676, %vm996
        %vm1125 = vmor %vm677, %vm997
        %vm1126 = vmor %vm678, %vm998
        %vm1127 = vmor %vm679, %vm999
        %vm1128 = vmor %vm680, %vm1000
        %vm1129 = vmor %vm681, %vm1001
        %vm1130 = vmor %vm682, %vm1002
        %vm1131 = vmor %vm683, %vm1003
        %vm1132 = vmor %vm684, %vm1004
        %vm1133 = vmor %vm685, %vm1005
        %vm1134 = vmor %vm686, %vm1006
        %vm1135 = vmor %vm687, %vm1007
        %vm1136 = vmor %vm688, %vm1008
        %vm1137 = vmor %vm689, %vm1009
        %vm1138 = vmor %vm690, %vm1010
        %vm1139 = vmor %vm691, %vm1011
        %vm1140 = vmor %vm692, %vm1012
        %vm1141 = vmor %vm693, %vm1013
        %vm1142 = vmor %vm694, %vm1014
        %vm1143 = vmor %vm695, %vm1015
        %vm1144 = vmor %vm696, %vm1016
        %vm1145 = vmor %vm697, %vm1017
        %vm1146 = vmor %vm698, %vm1018
        %vm1147 = vmor %vm699, %vm1019
        %vm1148 = vmor %vm700, %vm1020
        %vm1149 = vmor %vm701, %vm1021
        %vm1150 = vmor %vm702, %vm1022
        %vm1151 = vmor %vm703, %vm1023
        %vm1152 = vmor %vm704, %vm1024
        %vm1153 = vmor %vm705, %vm1025
        %vm1154 = vmor %vm706, %vm1026
        %vm1155 = vmor %vm707, %vm1027
        %vm1156 = vmor %vm708, %vm1028
        %v1157 = vsel %vm1029, 1, 0
        %v1158 = vsel %vm1030, 1, 0
        %v1159 = vsel %vm1031, 1, 0
        %v1160 = vsel %vm1032, 1, 0
        %v1161 = vsel %vm1033, 1, 0
        %v1162 = vsel %vm1034, 1, 0
        %v1163 = vsel %vm1035, 1, 0
        %v1164 = vsel %vm1036, 1, 0
        %v1165 = vsel %vm1037, 1, 0
        %v1166 = vsel %vm1038, 1, 0
        %v1167 = vsel %vm1039, 1, 0
        %v1168 = vsel %vm1040, 1, 0
        %v1169 = vsel %vm1041, 1, 0
        %v1170 = vsel %vm1042, 1, 0
        %v1171 = vsel %vm1043, 1, 0
        %v1172 = vsel %vm1044, 1, 0
        %v1173 = vsel %vm1045, 1, 0
        %v1174 = vsel %vm1046, 1, 0
        %v1175 = vsel %vm1047, 1, 0
        %v1176 = vsel %vm1048, 1, 0
        %v1177 = vsel %vm1049, 1, 0
        %v1178 = vsel %vm1050, 1, 0
        %v1179 = vsel %vm1051, 1, 0
        %v1180 = vsel %vm1052, 1, 0
        %v1181 = vsel %vm1053, 1, 0
        %v1182 = vsel %vm1054, 1, 0
        %v1183 = vsel %vm1055, 1, 0
        %v1184 = vsel %vm1056, 1, 0
        %v1185 = vsel %vm1057, 1, 0
        %v1186 = vsel %vm1058, 1, 0
        %v1187 = vsel %vm1059, 1, 0
        %v1188 = vsel %vm1060, 1, 0
        %v1189 = vsel %vm1061, 1, 0
        %v1190 = vsel %vm1062, 1, 0
        %v1191 = vsel %vm1063, 1, 0
        %v1192 = vsel %vm1064, 1, 0
        %v1193 = vsel %vm1065, 1, 0
        %v1194 = vsel %vm1066, 1, 0
        %v1195 = vsel %vm1067, 1, 0
        %v1196 = vsel %vm1068, 1, 0
        %v1197 = vsel %vm1069, 1, 0
        %v1198 = vsel %vm1070, 1, 0
        %v1199 = vsel %vm1071, 1, 0
        %v1200 = vsel %vm1072, 1, 0
        %v1201 = vsel %vm1073, 1, 0
        %v1202 = vsel %vm1074, 1, 0
        %v1203 = vsel %vm1075, 1, 0
        %v1204 = vsel %vm1076, 1, 0
        %v1205 = vsel %vm1077, 1, 0
        %v1206 = vsel %vm1078, 1, 0
        %v1207 = vsel %vm1079, 1, 0
        %v1208 = vsel %vm1080, 1, 0
        %v1209 = vsel %vm1081, 1, 0
        %v1210 = vsel %vm1082, 1, 0
        %v1211 = vsel %vm1083, 1, 0
        %v1212 = vsel %vm1084, 1, 0
        %v1213 = vsel %vm1085, 1, 0
        %v1214 = vsel %vm1086, 1, 0
        %v1215 = vsel %vm1087, 1, 0
        %v1216 = vsel %vm1088, 1, 0
        %v1217 = vsel %vm1089, 1, 0
        %v1218 = vsel %vm1090, 1, 0
        %v1219 = vsel %vm1091, 1, 0
        %v1220 = vsel %vm1092, 1, 0
        %v1221 = vsel %vm1093, 1, 0
        %v1222 = vsel %vm1094, 1, 0
        %v1223 = vsel %vm1095, 1, 0
        %v1224 = vsel %vm1096, 1, 0
        %v1225 = vsel %vm1097, 1, 0
        %v1226 = vsel %vm1098, 1, 0
        %v1227 = vsel %vm1099, 1, 0
        %v1228 = vsel %vm1100, 1, 0
        %v1229 = vsel %vm1101, 1, 0
        %v1230 = vsel %vm1102, 1, 0
        %v1231 = vsel %vm1103, 1, 0
        %v1232 = vsel %vm1104, 1, 0
        %v1233 = vsel %vm1105, 1, 0
        %v1234 = vsel %vm1106, 1, 0
        %v1235 = vsel %vm1107, 1, 0
        %v1236 = vsel %vm1108, 1, 0
        %v1237 = vsel %vm1109, 1, 0
        %v1238 = vsel %vm1110, 1, 0
        %v1239 = vsel %vm1111, 1, 0
        %v1240 = vsel %vm1112, 1, 0
        %v1241 = vsel %vm1113, 1, 0
        %v1242 = vsel %vm1114, 1, 0
        %v1243 = vsel %vm1115, 1, 0
        %v1244 = vsel %vm1116, 1, 0
        %v1245 = vsel %vm1117, 1, 0
        %v1246 = vsel %vm1118, 1, 0
        %v1247 = vsel %vm1119, 1, 0
        %v1248 = vsel %vm1120, 1, 0
        %v1249 = vsel %vm1121, 1, 0
        %v1250 = vsel %vm1122, 1, 0
        %v1251 = vsel %vm1123, 1, 0
        %v1252 = vsel %vm1124, 1, 0
        %v1253 = vsel %vm1125, 1, 0
        %v1254 = vsel %vm1126, 1, 0
        %v1255 = vsel %vm1127, 1, 0
        %v1256 = vsel %vm1128, 1, 0
        %v1257 = vsel %vm1129, 1, 0
        %v1258 = vsel %vm1130, 1, 0
        %v1259 = vsel %vm1131, 1, 0
        %v1260 = vsel %vm1132, 1, 0
        %v1261 = vsel %vm1133, 1, 0
        %v1262 = vsel %vm1134, 1, 0
        %v1263 = vsel %vm1135, 1, 0
        %v1264 = vsel %vm1136, 1, 0
        %v1265 = vsel %vm1137, 1, 0
        %v1266 = vsel %vm1138, 1, 0
        %v1267 = vsel %vm1139, 1, 0
        %v1268 = vsel %vm1140, 1, 0
        %v1269 = vsel %vm1141, 1, 0
        %v1270 = vsel %vm1142, 1, 0
        %v1271 = vsel %vm1143, 1, 0
        %v1272 = vsel %vm1144, 1, 0
        %v1273 = vsel %vm1145, 1, 0
        %v1274 = vsel %vm1146, 1, 0
        %v1275 = vsel %vm1147, 1, 0
        %v1276 = vsel %vm1148, 1, 0
        %v1277 = vsel %vm1149, 1, 0
        %v1278 = vsel %vm1150, 1, 0
        %v1279 = vsel %vm1151, 1, 0
        %v1280 = vsel %vm1152, 1, 0
        %v1281 = vsel %vm1153, 1, 0
        %v1282 = vsel %vm1154, 1, 0
        %v1283 = vsel %vm1155, 1, 0
        %v1284 = vsel %vm1156, 1, 0
        %v1285 = vcvt.s32.f32 %v1157
        %v1286 = vcvt.s32.f32 %v1158
        %v1287 = vcvt.s32.f32 %v1159
        %v1288 = vcvt.s32.f32 %v1160
        %v1289 = vcvt.s32.f32 %v1161
        %v1290 = vcvt.s32.f32 %v1162
        %v1291 = vcvt.s32.f32 %v1163
        %v1292 = vcvt.s32.f32 %v1164
        %v1293 = vcvt.s32.f32 %v1165
        %v1294 = vcvt.s32.f32 %v1166
        %v1295 = vcvt.s32.f32 %v1167
        %v1296 = vcvt.s32.f32 %v1168
        %v1297 = vcvt.s32.f32 %v1169
        %v1298 = vcvt.s32.f32 %v1170
        %v1299 = vcvt.s32.f32 %v1171
        %v1300 = vcvt.s32.f32 %v1172
        %v1301 = vcvt.s32.f32 %v1173
        %v1302 = vcvt.s32.f32 %v1174
        %v1303 = vcvt.s32.f32 %v1175
        %v1304 = vcvt.s32.f32 %v1176
        %v1305 = vcvt.s32.f32 %v1177
        %v1306 = vcvt.s32.f32 %v1178
        %v1307 = vcvt.s32.f32 %v1179
        %v1308 = vcvt.s32.f32 %v1180
        %v1309 = vcvt.s32.f32 %v1181
        %v1310 = vcvt.s32.f32 %v1182
        %v1311 = vcvt.s32.f32 %v1183
        %v1312 = vcvt.s32.f32 %v1184
        %v1313 = vcvt.s32.f32 %v1185
        %v1314 = vcvt.s32.f32 %v1186
        %v1315 = vcvt.s32.f32 %v1187
        %v1316 = vcvt.s32.f32 %v1188
        %v1317 = vcvt.s32.f32 %v1189
        %v1318 = vcvt.s32.f32 %v1190
        %v1319 = vcvt.s32.f32 %v1191
        %v1320 = vcvt.s32.f32 %v1192
        %v1321 = vcvt.s32.f32 %v1193
        %v1322 = vcvt.s32.f32 %v1194
        %v1323 = vcvt.s32.f32 %v1195
        %v1324 = vcvt.s32.f32 %v1196
        %v1325 = vcvt.s32.f32 %v1197
        %v1326 = vcvt.s32.f32 %v1198
        %v1327 = vcvt.s32.f32 %v1199
        %v1328 = vcvt.s32.f32 %v1200
        %v1329 = vcvt.s32.f32 %v1201
        %v1330 = vcvt.s32.f32 %v1202
        %v1331 = vcvt.s32.f32 %v1203
        %v1332 = vcvt.s32.f32 %v1204
        %v1333 = vcvt.s32.f32 %v1205
        %v1334 = vcvt.s32.f32 %v1206
        %v1335 = vcvt.s32.f32 %v1207
        %v1336 = vcvt.s32.f32 %v1208
        %v1337 = vcvt.s32.f32 %v1209
        %v1338 = vcvt.s32.f32 %v1210
        %v1339 = vcvt.s32.f32 %v1211
        %v1340 = vcvt.s32.f32 %v1212
        %v1341 = vcvt.s32.f32 %v1213
        %v1342 = vcvt.s32.f32 %v1214
        %v1343 = vcvt.s32.f32 %v1215
        %v1344 = vcvt.s32.f32 %v1216
        %v1345 = vcvt.s32.f32 %v1217
        %v1346 = vcvt.s32.f32 %v1218
        %v1347 = vcvt.s32.f32 %v1219
        %v1348 = vcvt.s32.f32 %v1220
        %v1349 = vcvt.s32.f32 %v1221
        %v1350 = vcvt.s32.f32 %v1222
        %v1351 = vcvt.s32.f32 %v1223
        %v1352 = vcvt.s32.f32 %v1224
        %v1353 = vcvt.s32.f32 %v1225
        %v1354 = vcvt.s32.f32 %v1226
        %v1355 = vcvt.s32.f32 %v1227
        %v1356 = vcvt.s32.f32 %v1228
        %v1357 = vcvt.s32.f32 %v1229
        %v1358 = vcvt.s32.f32 %v1230
        %v1359 = vcvt.s32.f32 %v1231
        %v1360 = vcvt.s32.f32 %v1232
        %v1361 = vcvt.s32.f32 %v1233
        %v1362 = vcvt.s32.f32 %v1234
        %v1363 = vcvt.s32.f32 %v1235
        %v1364 = vcvt.s32.f32 %v1236
        %v1365 = vcvt.s32.f32 %v1237
        %v1366 = vcvt.s32.f32 %v1238
        %v1367 = vcvt.s32.f32 %v1239
        %v1368 = vcvt.s32.f32 %v1240
        %v1369 = vcvt.s32.f32 %v1241
        %v1370 = vcvt.s32.f32 %v1242
        %v1371 = vcvt.s32.f32 %v1243
        %v1372 = vcvt.s32.f32 %v1244
        %v1373 = vcvt.s32.f32 %v1245
        %v1374 = vcvt.s32.f32 %v1246
        %v1375 = vcvt.s32.f32 %v1247
        %v1376 = vcvt.s32.f32 %v1248
        %v1377 = vcvt.s32.f32 %v1249
        %v1378 = vcvt.s32.f32 %v1250
        %v1379 = vcvt.s32.f32 %v1251
        %v1380 = vcvt.s32.f32 %v1252
        %v1381 = vcvt.s32.f32 %v1253
        %v1382 = vcvt.s32.f32 %v1254
        %v1383 = vcvt.s32.f32 %v1255
        %v1384 = vcvt.s32.f32 %v1256
        %v1385 = vcvt.s32.f32 %v1257
        %v1386 = vcvt.s32.f32 %v1258
        %v1387 = vcvt.s32.f32 %v1259
        %v1388 = vcvt.s32.f32 %v1260
        %v1389 = vcvt.s32.f32 %v1261
        %v1390 = vcvt.s32.f32 %v1262
        %v1391 = vcvt.s32.f32 %v1263
        %v1392 = vcvt.s32.f32 %v1264
        %v1393 = vcvt.s32.f32 %v1265
        %v1394 = vcvt.s32.f32 %v1266
        %v1395 = vcvt.s32.f32 %v1267
        %v1396 = vcvt.s32.f32 %v1268
        %v1397 = vcvt.s32.f32 %v1269
        %v1398 = vcvt.s32.f32 %v1270
        %v1399 = vcvt.s32.f32 %v1271
        %v1400 = vcvt.s32.f32 %v1272
        %v1401 = vcvt.s32.f32 %v1273
        %v1402 = vcvt.s32.f32 %v1274
        %v1403 = vcvt.s32.f32 %v1275
        %v1404 = vcvt.s32.f32 %v1276
        %v1405 = vcvt.s32.f32 %v1277
        %v1406 = vcvt.s32.f32 %v1278
        %v1407 = vcvt.s32.f32 %v1279
        %v1408 = vcvt.s32.f32 %v1280
        %v1409 = vcvt.s32.f32 %v1281
        %v1410 = vcvt.s32.f32 %v1282
        %v1411 = vcvt.s32.f32 %v1283
        %v1412 = vcvt.s32.f32 %v1284
        %v1413 = vld [vmem:[%s2] sm:$0xff]
        %v1414 = vld [vmem:[%s2 + $0x8] sm:$0xff]
        %v1415 = vld [vmem:[%s2 + $0x10] sm:$0xff]
        %v1416 = vld [vmem:[%s2 + $0x18] sm:$0xff]
        %v1417 = vld [vmem:[%s2 + $0x20] sm:$0xff]
        %v1418 = vld [vmem:[%s2 + $0x28] sm:$0xff]
        %v1419 = vld [vmem:[%s2 + $0x30] sm:$0xff]
        %v1420 = vld [vmem:[%s2 + $0x38] sm:$0xff]
        %v1421 = vld [vmem:[%s2 + $0x40] sm:$0xff]
        %v1422 = vld [vmem:[%s2 + $0x48] sm:$0xff]
        %v1423 = vld [vmem:[%s2 + $0x50] sm:$0xff]
        %v1424 = vld [vmem:[%s2 + $0x58] sm:$0xff]
        %v1425 = vld [vmem:[%s2 + $0x60] sm:$0xff]
        %v1426 = vld [vmem:[%s2 + $0x68] sm:$0xff]
        %v1427 = vld [vmem:[%s2 + $0x70] sm:$0xff]
        %v1428 = vld [vmem:[%s2 + $0x78] sm:$0xff]
        %v1429 = vld [vmem:[%s2 + $0x80] sm:$0xff]
        %v1430 = vld [vmem:[%s2 + $0x88] sm:$0xff]
        %v1431 = vld [vmem:[%s2 + $0x90] sm:$0xff]
        %v1432 = vld [vmem:[%s2 + $0x98] sm:$0xff]
        %v1433 = vld [vmem:[%s2 + $0xa0] sm:$0xff]
        %v1434 = vld [vmem:[%s2 + $0xa8] sm:$0xff]
        %v1435 = vld [vmem:[%s2 + $0xb0] sm:$0xff]
        %v1436 = vld [vmem:[%s2 + $0xb8] sm:$0xff]
        %v1437 = vld [vmem:[%s2 + $0xc0] sm:$0xff]
        %v1438 = vld [vmem:[%s2 + $0xc8] sm:$0xff]
        %v1439 = vld [vmem:[%s2 + $0xd0] sm:$0xff]
        %v1440 = vld [vmem:[%s2 + $0xd8] sm:$0xff]
        %v1441 = vld [vmem:[%s2 + $0xe0] sm:$0xff]
        %v1442 = vld [vmem:[%s2 + $0xe8] sm:$0xff]
        %v1443 = vld [vmem:[%s2 + $0xf0] sm:$0xff]
        %v1444 = vld [vmem:[%s2 + $0xf8] sm:$0xff]
        %v1445 = vld [vmem:[%s2 + $0x100] sm:$0xff]
        %v1446 = vld [vmem:[%s2 + $0x108] sm:$0xff]
        %v1447 = vld [vmem:[%s2 + $0x110] sm:$0xff]
        %v1448 = vld [vmem:[%s2 + $0x118] sm:$0xff]
        %v1449 = vld [vmem:[%s2 + $0x120] sm:$0xff]
        %v1450 = vld [vmem:[%s2 + $0x128] sm:$0xff]
        %v1451 = vld [vmem:[%s2 + $0x130] sm:$0xff]
        %v1452 = vld [vmem:[%s2 + $0x138] sm:$0xff]
        %v1453 = vld [vmem:[%s2 + $0x140] sm:$0xff]
        %v1454 = vld [vmem:[%s2 + $0x148] sm:$0xff]
        %v1455 = vld [vmem:[%s2 + $0x150] sm:$0xff]
        %v1456 = vld [vmem:[%s2 + $0x158] sm:$0xff]
        %v1457 = vld [vmem:[%s2 + $0x160] sm:$0xff]
        %v1458 = vld [vmem:[%s2 + $0x168] sm:$0xff]
        %v1459 = vld [vmem:[%s2 + $0x170] sm:$0xff]
        %v1460 = vld [vmem:[%s2 + $0x178] sm:$0xff]
        %v1461 = vld [vmem:[%s2 + $0x180] sm:$0xff]
        %v1462 = vld [vmem:[%s2 + $0x188] sm:$0xff]
        %v1463 = vld [vmem:[%s2 + $0x190] sm:$0xff]
        %v1464 = vld [vmem:[%s2 + $0x198] sm:$0xff]
        %v1465 = vld [vmem:[%s2 + $0x1a0] sm:$0xff]
        %v1466 = vld [vmem:[%s2 + $0x1a8] sm:$0xff]
        %v1467 = vld [vmem:[%s2 + $0x1b0] sm:$0xff]
        %v1468 = vld [vmem:[%s2 + $0x1b8] sm:$0xff]
        %v1469 = vld [vmem:[%s2 + $0x1c0] sm:$0xff]
        %v1470 = vld [vmem:[%s2 + $0x1c8] sm:$0xff]
        %v1471 = vld [vmem:[%s2 + $0x1d0] sm:$0xff]
        %v1472 = vld [vmem:[%s2 + $0x1d8] sm:$0xff]
        %v1473 = vld [vmem:[%s2 + $0x1e0] sm:$0xff]
        %v1474 = vld [vmem:[%s2 + $0x1e8] sm:$0xff]
        %v1475 = vld [vmem:[%s2 + $0x1f0] sm:$0xff]
        %v1476 = vld [vmem:[%s2 + $0x1f8] sm:$0xff]
        %1477 = vmatprep.subr.mxu0 %v1444
        %1478 = vmatpush1.msra.mxu0 %v1443
        %1479 = vmatprep.subr.mxu0 %v1442
        %1480 = vmatpush1.msra.mxu0 %v1441
        %1481 = vmatprep.subr.mxu0 %v1440
        %1482 = vmatpush1.msra.mxu0 %v1439
        %1483 = vmatprep.subr.mxu0 %v1438
        %1484 = vmatpush1.msra.mxu0 %v1437
        %1485 = vmatprep.subr.mxu0 %v1436
        %1486 = vmatpush1.msra.mxu0 %v1435
        %1487 = vmatprep.subr.mxu0 %v1434
        %1488 = vmatpush1.msra.mxu0 %v1433
        %1489 = vmatprep.subr.mxu0 %v1432
        %1490 = vmatpush1.msra.mxu0 %v1431
        %1491 = vmatprep.subr.mxu0 %v1430
        %1492 = vmatpush1.msra.mxu0 %v1429
        %1493 = vmatprep.subr.mxu0 %v1428
        %1494 = vmatpush1.msra.mxu0 %v1427
        %1495 = vmatprep.subr.mxu0 %v1426
        %1496 = vmatpush1.msra.mxu0 %v1425
        %1497 = vmatprep.subr.mxu0 %v1424
        %1498 = vmatpush1.msra.mxu0 %v1423
        %1499 = vmatprep.subr.mxu0 %v1422
        %1500 = vmatpush1.msra.mxu0 %v1421
        %1501 = vmatprep.subr.mxu0 %v1420
        %1502 = vmatpush1.msra.mxu0 %v1419
        %1503 = vmatprep.subr.mxu0 %v1418
        %1504 = vmatpush1.msra.mxu0 %v1417
        %1505 = vmatprep.subr.mxu0 %v1416
        %1506 = vmatpush1.msra.mxu0 %v1415
        %1507 = vmatprep.subr.mxu0 %v1414
        %1508 = vmatpush1.msra.mxu0 %v1413
        %1509 = vmatprep.subr.mxu0 %v1476
        %1510 = vmatpush2.msra.mxu0 %v1475
        %1511 = vmatprep.subr.mxu0 %v1474
        %1512 = vmatpush2.msra.mxu0 %v1473
        %1513 = vmatprep.subr.mxu0 %v1472
        %1514 = vmatpush2.msra.mxu0 %v1471
        %1515 = vmatprep.subr.mxu0 %v1470
        %1516 = vmatpush2.msra.mxu0 %v1469
        %1517 = vmatprep.subr.mxu0 %v1468
        %1518 = vmatpush2.msra.mxu0 %v1467
        %1519 = vmatprep.subr.mxu0 %v1466
        %1520 = vmatpush2.msra.mxu0 %v1465
        %1521 = vmatprep.subr.mxu0 %v1464
        %1522 = vmatpush2.msra.mxu0 %v1463
        %1523 = vmatprep.subr.mxu0 %v1462
        %1524 = vmatpush2.msra.mxu0 %v1461
        %1525 = vmatprep.subr.mxu0 %v1460
        %1526 = vmatpush2.msra.mxu0 %v1459
        %1527 = vmatprep.subr.mxu0 %v1458
        %1528 = vmatpush2.msra.mxu0 %v1457
        %1529 = vmatprep.subr.mxu0 %v1456
        %1530 = vmatpush2.msra.mxu0 %v1455
        %1531 = vmatprep.subr.mxu0 %v1454
        %1532 = vmatpush2.msra.mxu0 %v1453
        %1533 = vmatprep.subr.mxu0 %v1452
        %1534 = vmatpush2.msra.mxu0 %v1451
        %1535 = vmatprep.subr.mxu0 %v1450
        %1536 = vmatpush2.msra.mxu0 %v1449
        %1537 = vmatprep.subr.mxu0 %v1448
        %1538 = vmatpush2.msra.mxu0 %v1447
        %1539 = vmatprep.subr.mxu0 %v1446
        %1540 = vmatpush2.msra.mxu0 %v1445
        %1541 = vmatprep.mubr.f32.mxu0 %v1286
        %1542 = vmatmul.mubr.f32.gmra.mxu0 %v1285
        %v1543 = vpop.f32.mrf.mxu0
        %v1544 = vadd.f32 0.0, %v1543
        %v1545 = vpop.f32.mrf.mxu0
        %v1546 = vadd.f32 0.0, %v1545
        %1547 = vmatprep.mubr.f32.mxu0 %v1288
        %1548 = vmatmul.mubr.f32.gmra.mxu0 %v1287
        %v1549 = vpop.f32.mrf.mxu0
        %v1550 = vadd.f32 0.0, %v1549
        %v1551 = vpop.f32.mrf.mxu0
        %v1552 = vadd.f32 0.0, %v1551
        %1553 = vmatprep.mubr.f32.mxu0 %v1290
        %1554 = vmatmul.mubr.f32.gmra.mxu0 %v1289
        %v1555 = vpop.f32.mrf.mxu0
        %v1556 = vadd.f32 0.0, %v1555
        %v1557 = vpop.f32.mrf.mxu0
        %v1558 = vadd.f32 0.0, %v1557
        %1559 = vmatprep.mubr.f32.mxu0 %v1292
        %1560 = vmatmul.mubr.f32.gmra.mxu0 %v1291
        %v1561 = vpop.f32.mrf.mxu0
        %v1562 = vadd.f32 0.0, %v1561
        %v1563 = vpop.f32.mrf.mxu0
        %v1564 = vadd.f32 0.0, %v1563
        %1565 = vmatprep.mubr.f32.mxu0 %v1294
        %1566 = vmatmul.mubr.f32.gmra.mxu0 %v1293
        %v1567 = vpop.f32.mrf.mxu0
        %v1568 = vadd.f32 0.0, %v1567
        %v1569 = vpop.f32.mrf.mxu0
        %v1570 = vadd.f32 0.0, %v1569
        %1571 = vmatprep.mubr.f32.mxu0 %v1296
        %1572 = vmatmul.mubr.f32.gmra.mxu0 %v1295
        %v1573 = vpop.f32.mrf.mxu0
        %v1574 = vadd.f32 0.0, %v1573
        %v1575 = vpop.f32.mrf.mxu0
        %v1576 = vadd.f32 0.0, %v1575
        %1577 = vmatprep.mubr.f32.mxu0 %v1298
        %1578 = vmatmul.mubr.f32.gmra.mxu0 %v1297
        %v1579 = vpop.f32.mrf.mxu0
        %v1580 = vadd.f32 0.0, %v1579
        %v1581 = vpop.f32.mrf.mxu0
        %v1582 = vadd.f32 0.0, %v1581
        %1583 = vmatprep.mubr.f32.mxu0 %v1300
        %1584 = vmatmul.mubr.f32.gmra.mxu0 %v1299
        %v1585 = vpop.f32.mrf.mxu0
        %v1586 = vadd.f32 0.0, %v1585
        %v1587 = vpop.f32.mrf.mxu0
        %v1588 = vadd.f32 0.0, %v1587
        %1589 = vmatprep.mubr.f32.mxu0 %v1302
        %1590 = vmatmul.mubr.f32.gmra.mxu0 %v1301
        %v1591 = vpop.f32.mrf.mxu0
        %v1592 = vadd.f32 0.0, %v1591
        %v1593 = vpop.f32.mrf.mxu0
        %v1594 = vadd.f32 0.0, %v1593
        %1595 = vmatprep.mubr.f32.mxu0 %v1304
        %1596 = vmatmul.mubr.f32.gmra.mxu0 %v1303
        %v1597 = vpop.f32.mrf.mxu0
        %v1598 = vadd.f32 0.0, %v1597
        %v1599 = vpop.f32.mrf.mxu0
        %v1600 = vadd.f32 0.0, %v1599
        %1601 = vmatprep.mubr.f32.mxu0 %v1306
        %1602 = vmatmul.mubr.f32.gmra.mxu0 %v1305
        %v1603 = vpop.f32.mrf.mxu0
        %v1604 = vadd.f32 0.0, %v1603
        %v1605 = vpop.f32.mrf.mxu0
        %v1606 = vadd.f32 0.0, %v1605
        %1607 = vmatprep.mubr.f32.mxu0 %v1308
        %1608 = vmatmul.mubr.f32.gmra.mxu0 %v1307
        %v1609 = vpop.f32.mrf.mxu0
        %v1610 = vadd.f32 0.0, %v1609
        %v1611 = vpop.f32.mrf.mxu0
        %v1612 = vadd.f32 0.0, %v1611
        %1613 = vmatprep.mubr.f32.mxu0 %v1310
        %1614 = vmatmul.mubr.f32.gmra.mxu0 %v1309
        %v1615 = vpop.f32.mrf.mxu0
        %v1616 = vadd.f32 0.0, %v1615
        %v1617 = vpop.f32.mrf.mxu0
        %v1618 = vadd.f32 0.0, %v1617
        %1619 = vmatprep.mubr.f32.mxu0 %v1312
        %1620 = vmatmul.mubr.f32.gmra.mxu0 %v1311
        %v1621 = vpop.f32.mrf.mxu0
        %v1622 = vadd.f32 0.0, %v1621
        %v1623 = vpop.f32.mrf.mxu0
        %v1624 = vadd.f32 0.0, %v1623
        %1625 = vmatprep.mubr.f32.mxu0 %v1314
        %1626 = vmatmul.mubr.f32.gmra.mxu0 %v1313
        %v1627 = vpop.f32.mrf.mxu0
        %v1628 = vadd.f32 0.0, %v1627
        %v1629 = vpop.f32.mrf.mxu0
        %v1630 = vadd.f32 0.0, %v1629
        %1631 = vmatprep.mubr.f32.mxu0 %v1316
        %1632 = vmatmul.mubr.f32.gmra.mxu0 %v1315
        %v1633 = vpop.f32.mrf.mxu0
        %v1634 = vadd.f32 0.0, %v1633
        %v1635 = vpop.f32.mrf.mxu0
        %v1636 = vadd.f32 0.0, %v1635
        %1637 = vmatprep.mubr.f32.mxu0 %v1318
        %1638 = vmatmul.mubr.f32.gmra.mxu0 %v1317
        %v1639 = vpop.f32.mrf.mxu0
        %v1640 = vadd.f32 0.0, %v1639
        %v1641 = vpop.f32.mrf.mxu0
        %v1642 = vadd.f32 0.0, %v1641
        %1643 = vmatprep.mubr.f32.mxu0 %v1320
        %1644 = vmatmul.mubr.f32.gmra.mxu0 %v1319
        %v1645 = vpop.f32.mrf.mxu0
        %v1646 = vadd.f32 0.0, %v1645
        %v1647 = vpop.f32.mrf.mxu0
        %v1648 = vadd.f32 0.0, %v1647
        %1649 = vmatprep.mubr.f32.mxu0 %v1322
        %1650 = vmatmul.mubr.f32.gmra.mxu0 %v1321
        %v1651 = vpop.f32.mrf.mxu0
        %v1652 = vadd.f32 0.0, %v1651
        %v1653 = vpop.f32.mrf.mxu0
        %v1654 = vadd.f32 0.0, %v1653
        %1655 = vmatprep.mubr.f32.mxu0 %v1324
        %1656 = vmatmul.mubr.f32.gmra.mxu0 %v1323
        %v1657 = vpop.f32.mrf.mxu0
        %v1658 = vadd.f32 0.0, %v1657
        %v1659 = vpop.f32.mrf.mxu0
        %v1660 = vadd.f32 0.0, %v1659
        %1661 = vmatprep.mubr.f32.mxu0 %v1326
        %1662 = vmatmul.mubr.f32.gmra.mxu0 %v1325
        %v1663 = vpop.f32.mrf.mxu0
        %v1664 = vadd.f32 0.0, %v1663
        %v1665 = vpop.f32.mrf.mxu0
        %v1666 = vadd.f32 0.0, %v1665
        %1667 = vmatprep.mubr.f32.mxu0 %v1328
        %1668 = vmatmul.mubr.f32.gmra.mxu0 %v1327
        %v1669 = vpop.f32.mrf.mxu0
        %v1670 = vadd.f32 0.0, %v1669
        %v1671 = vpop.f32.mrf.mxu0
        %v1672 = vadd.f32 0.0, %v1671
        %1673 = vmatprep.mubr.f32.mxu0 %v1330
        %1674 = vmatmul.mubr.f32.gmra.mxu0 %v1329
        %v1675 = vpop.f32.mrf.mxu0
        %v1676 = vadd.f32 0.0, %v1675
        %v1677 = vpop.f32.mrf.mxu0
        %v1678 = vadd.f32 0.0, %v1677
        %1679 = vmatprep.mubr.f32.mxu0 %v1332
        %1680 = vmatmul.mubr.f32.gmra.mxu0 %v1331
        %v1681 = vpop.f32.mrf.mxu0
        %v1682 = vadd.f32 0.0, %v1681
        %v1683 = vpop.f32.mrf.mxu0
        %v1684 = vadd.f32 0.0, %v1683
        %1685 = vmatprep.mubr.f32.mxu0 %v1334
        %1686 = vmatmul.mubr.f32.gmra.mxu0 %v1333
        %v1687 = vpop.f32.mrf.mxu0
        %v1688 = vadd.f32 0.0, %v1687
        %v1689 = vpop.f32.mrf.mxu0
        %v1690 = vadd.f32 0.0, %v1689
        %1691 = vmatprep.mubr.f32.mxu0 %v1336
        %1692 = vmatmul.mubr.f32.gmra.mxu0 %v1335
        %v1693 = vpop.f32.mrf.mxu0
        %v1694 = vadd.f32 0.0, %v1693
        %v1695 = vpop.f32.mrf.mxu0
        %v1696 = vadd.f32 0.0, %v1695
        %1697 = vmatprep.mubr.f32.mxu0 %v1338
        %1698 = vmatmul.mubr.f32.gmra.mxu0 %v1337
        %v1699 = vpop.f32.mrf.mxu0
        %v1700 = vadd.f32 0.0, %v1699
        %v1701 = vpop.f32.mrf.mxu0
        %v1702 = vadd.f32 0.0, %v1701
        %1703 = vmatprep.mubr.f32.mxu0 %v1340
        %1704 = vmatmul.mubr.f32.gmra.mxu0 %v1339
        %v1705 = vpop.f32.mrf.mxu0
        %v1706 = vadd.f32 0.0, %v1705
        %v1707 = vpop.f32.mrf.mxu0
        %v1708 = vadd.f32 0.0, %v1707
        %1709 = vmatprep.mubr.f32.mxu0 %v1342
        %1710 = vmatmul.mubr.f32.gmra.mxu0 %v1341
        %v1711 = vpop.f32.mrf.mxu0
        %v1712 = vadd.f32 0.0, %v1711
        %v1713 = vpop.f32.mrf.mxu0
        %v1714 = vadd.f32 0.0, %v1713
        %1715 = vmatprep.mubr.f32.mxu0 %v1344
        %1716 = vmatmul.mubr.f32.gmra.mxu0 %v1343
        %v1717 = vpop.f32.mrf.mxu0
        %v1718 = vadd.f32 0.0, %v1717
        %v1719 = vpop.f32.mrf.mxu0
        %v1720 = vadd.f32 0.0, %v1719
        %1721 = vmatprep.mubr.f32.mxu0 %v1346
        %1722 = vmatmul.mubr.f32.gmra.mxu0 %v1345
        %v1723 = vpop.f32.mrf.mxu0
        %v1724 = vadd.f32 0.0, %v1723
        %v1725 = vpop.f32.mrf.mxu0
        %v1726 = vadd.f32 0.0, %v1725
        %1727 = vmatprep.mubr.f32.mxu0 %v1348
        %1728 = vmatmul.mubr.f32.gmra.mxu0 %v1347
        %v1729 = vpop.f32.mrf.mxu0
        %v1730 = vadd.f32 0.0, %v1729
        %v1731 = vpop.f32.mrf.mxu0
        %v1732 = vadd.f32 0.0, %v1731
        %1733 = vmatprep.mubr.f32.mxu0 %v1350
        %1734 = vmatmul.mubr.f32.gmra.mxu0 %v1349
        %v1735 = vpop.f32.mrf.mxu0
        %v1736 = vadd.f32 0.0, %v1735
        %v1737 = vpop.f32.mrf.mxu0
        %v1738 = vadd.f32 0.0, %v1737
        %1739 = vmatprep.mubr.f32.mxu0 %v1352
        %1740 = vmatmul.mubr.f32.gmra.mxu0 %v1351
        %v1741 = vpop.f32.mrf.mxu0
        %v1742 = vadd.f32 0.0, %v1741
        %v1743 = vpop.f32.mrf.mxu0
        %v1744 = vadd.f32 0.0, %v1743
        %1745 = vmatprep.mubr.f32.mxu0 %v1354
        %1746 = vmatmul.mubr.f32.gmra.mxu0 %v1353
        %v1747 = vpop.f32.mrf.mxu0
        %v1748 = vadd.f32 0.0, %v1747
        %v1749 = vpop.f32.mrf.mxu0
        %v1750 = vadd.f32 0.0, %v1749
        %1751 = vmatprep.mubr.f32.mxu0 %v1356
        %1752 = vmatmul.mubr.f32.gmra.mxu0 %v1355
        %v1753 = vpop.f32.mrf.mxu0
        %v1754 = vadd.f32 0.0, %v1753
        %v1755 = vpop.f32.mrf.mxu0
        %v1756 = vadd.f32 0.0, %v1755
        %1757 = vmatprep.mubr.f32.mxu0 %v1358
        %1758 = vmatmul.mubr.f32.gmra.mxu0 %v1357
        %v1759 = vpop.f32.mrf.mxu0
        %v1760 = vadd.f32 0.0, %v1759
        %v1761 = vpop.f32.mrf.mxu0
        %v1762 = vadd.f32 0.0, %v1761
        %1763 = vmatprep.mubr.f32.mxu0 %v1360
        %1764 = vmatmul.mubr.f32.gmra.mxu0 %v1359
        %v1765 = vpop.f32.mrf.mxu0
        %v1766 = vadd.f32 0.0, %v1765
        %v1767 = vpop.f32.mrf.mxu0
        %v1768 = vadd.f32 0.0, %v1767
        %1769 = vmatprep.mubr.f32.mxu0 %v1362
        %1770 = vmatmul.mubr.f32.gmra.mxu0 %v1361
        %v1771 = vpop.f32.mrf.mxu0
        %v1772 = vadd.f32 0.0, %v1771
        %v1773 = vpop.f32.mrf.mxu0
        %v1774 = vadd.f32 0.0, %v1773
        %1775 = vmatprep.mubr.f32.mxu0 %v1364
        %1776 = vmatmul.mubr.f32.gmra.mxu0 %v1363
        %v1777 = vpop.f32.mrf.mxu0
        %v1778 = vadd.f32 0.0, %v1777
        %v1779 = vpop.f32.mrf.mxu0
        %v1780 = vadd.f32 0.0, %v1779
        %1781 = vmatprep.mubr.f32.mxu0 %v1366
        %1782 = vmatmul.mubr.f32.gmra.mxu0 %v1365
        %v1783 = vpop.f32.mrf.mxu0
        %v1784 = vadd.f32 0.0, %v1783
        %v1785 = vpop.f32.mrf.mxu0
        %v1786 = vadd.f32 0.0, %v1785
        %1787 = vmatprep.mubr.f32.mxu0 %v1368
        %1788 = vmatmul.mubr.f32.gmra.mxu0 %v1367
        %v1789 = vpop.f32.mrf.mxu0
        %v1790 = vadd.f32 0.0, %v1789
        %v1791 = vpop.f32.mrf.mxu0
        %v1792 = vadd.f32 0.0, %v1791
        %1793 = vmatprep.mubr.f32.mxu0 %v1370
        %1794 = vmatmul.mubr.f32.gmra.mxu0 %v1369
        %v1795 = vpop.f32.mrf.mxu0
        %v1796 = vadd.f32 0.0, %v1795
        %v1797 = vpop.f32.mrf.mxu0
        %v1798 = vadd.f32 0.0, %v1797
        %1799 = vmatprep.mubr.f32.mxu0 %v1372
        %1800 = vmatmul.mubr.f32.gmra.mxu0 %v1371
        %v1801 = vpop.f32.mrf.mxu0
        %v1802 = vadd.f32 0.0, %v1801
        %v1803 = vpop.f32.mrf.mxu0
        %v1804 = vadd.f32 0.0, %v1803
        %1805 = vmatprep.mubr.f32.mxu0 %v1374
        %1806 = vmatmul.mubr.f32.gmra.mxu0 %v1373
        %v1807 = vpop.f32.mrf.mxu0
        %v1808 = vadd.f32 0.0, %v1807
        %v1809 = vpop.f32.mrf.mxu0
        %v1810 = vadd.f32 0.0, %v1809
        %1811 = vmatprep.mubr.f32.mxu0 %v1376
        %1812 = vmatmul.mubr.f32.gmra.mxu0 %v1375
        %v1813 = vpop.f32.mrf.mxu0
        %v1814 = vadd.f32 0.0, %v1813
        %v1815 = vpop.f32.mrf.mxu0
        %v1816 = vadd.f32 0.0, %v1815
        %1817 = vmatprep.mubr.f32.mxu0 %v1378
        %1818 = vmatmul.mubr.f32.gmra.mxu0 %v1377
        %v1819 = vpop.f32.mrf.mxu0
        %v1820 = vadd.f32 0.0, %v1819
        %v1821 = vpop.f32.mrf.mxu0
        %v1822 = vadd.f32 0.0, %v1821
        %1823 = vmatprep.mubr.f32.mxu0 %v1380
        %1824 = vmatmul.mubr.f32.gmra.mxu0 %v1379
        %v1825 = vpop.f32.mrf.mxu0
        %v1826 = vadd.f32 0.0, %v1825
        %v1827 = vpop.f32.mrf.mxu0
        %v1828 = vadd.f32 0.0, %v1827
        %1829 = vmatprep.mubr.f32.mxu0 %v1382
        %1830 = vmatmul.mubr.f32.gmra.mxu0 %v1381
        %v1831 = vpop.f32.mrf.mxu0
        %v1832 = vadd.f32 0.0, %v1831
        %v1833 = vpop.f32.mrf.mxu0
        %v1834 = vadd.f32 0.0, %v1833
        %1835 = vmatprep.mubr.f32.mxu0 %v1384
        %1836 = vmatmul.mubr.f32.gmra.mxu0 %v1383
        %v1837 = vpop.f32.mrf.mxu0
        %v1838 = vadd.f32 0.0, %v1837
        %v1839 = vpop.f32.mrf.mxu0
        %v1840 = vadd.f32 0.0, %v1839
        %1841 = vmatprep.mubr.f32.mxu0 %v1386
        %1842 = vmatmul.mubr.f32.gmra.mxu0 %v1385
        %v1843 = vpop.f32.mrf.mxu0
        %v1844 = vadd.f32 0.0, %v1843
        %v1845 = vpop.f32.mrf.mxu0
        %v1846 = vadd.f32 0.0, %v1845
        %1847 = vmatprep.mubr.f32.mxu0 %v1388
        %1848 = vmatmul.mubr.f32.gmra.mxu0 %v1387
        %v1849 = vpop.f32.mrf.mxu0
        %v1850 = vadd.f32 0.0, %v1849
        %v1851 = vpop.f32.mrf.mxu0
        %v1852 = vadd.f32 0.0, %v1851
        %1853 = vmatprep.mubr.f32.mxu0 %v1390
        %1854 = vmatmul.mubr.f32.gmra.mxu0 %v1389
        %v1855 = vpop.f32.mrf.mxu0
        %v1856 = vadd.f32 0.0, %v1855
        %v1857 = vpop.f32.mrf.mxu0
        %v1858 = vadd.f32 0.0, %v1857
        %1859 = vmatprep.mubr.f32.mxu0 %v1392
        %1860 = vmatmul.mubr.f32.gmra.mxu0 %v1391
        %v1861 = vpop.f32.mrf.mxu0
        %v1862 = vadd.f32 0.0, %v1861
        %v1863 = vpop.f32.mrf.mxu0
        %v1864 = vadd.f32 0.0, %v1863
        %1865 = vmatprep.mubr.f32.mxu0 %v1394
        %1866 = vmatmul.mubr.f32.gmra.mxu0 %v1393
        %v1867 = vpop.f32.mrf.mxu0
        %v1868 = vadd.f32 0.0, %v1867
        %v1869 = vpop.f32.mrf.mxu0
        %v1870 = vadd.f32 0.0, %v1869
        %1871 = vmatprep.mubr.f32.mxu0 %v1396
        %1872 = vmatmul.mubr.f32.gmra.mxu0 %v1395
        %v1873 = vpop.f32.mrf.mxu0
        %v1874 = vadd.f32 0.0, %v1873
        %v1875 = vpop.f32.mrf.mxu0
        %v1876 = vadd.f32 0.0, %v1875
        %1877 = vmatprep.mubr.f32.mxu0 %v1398
        %1878 = vmatmul.mubr.f32.gmra.mxu0 %v1397
        %v1879 = vpop.f32.mrf.mxu0
        %v1880 = vadd.f32 0.0, %v1879
        %v1881 = vpop.f32.mrf.mxu0
        %v1882 = vadd.f32 0.0, %v1881
        %1883 = vmatprep.mubr.f32.mxu0 %v1400
        %1884 = vmatmul.mubr.f32.gmra.mxu0 %v1399
        %v1885 = vpop.f32.mrf.mxu0
        %v1886 = vadd.f32 0.0, %v1885
        %v1887 = vpop.f32.mrf.mxu0
        %v1888 = vadd.f32 0.0, %v1887
        %1889 = vmatprep.mubr.f32.mxu0 %v1402
        %1890 = vmatmul.mubr.f32.gmra.mxu0 %v1401
        %v1891 = vpop.f32.mrf.mxu0
        %v1892 = vadd.f32 0.0, %v1891
        %v1893 = vpop.f32.mrf.mxu0
        %v1894 = vadd.f32 0.0, %v1893
        %1895 = vmatprep.mubr.f32.mxu0 %v1404
        %1896 = vmatmul.mubr.f32.gmra.mxu0 %v1403
        %v1897 = vpop.f32.mrf.mxu0
        %v1898 = vadd.f32 0.0, %v1897
        %v1899 = vpop.f32.mrf.mxu0
        %v1900 = vadd.f32 0.0, %v1899
        %1901 = vmatprep.mubr.f32.mxu0 %v1406
        %1902 = vmatmul.mubr.f32.gmra.mxu0 %v1405
        %v1903 = vpop.f32.mrf.mxu0
        %v1904 = vadd.f32 0.0, %v1903
        %v1905 = vpop.f32.mrf.mxu0
        %v1906 = vadd.f32 0.0, %v1905
        %1907 = vmatprep.mubr.f32.mxu0 %v1408
        %1908 = vmatmul.mubr.f32.gmra.mxu0 %v1407
        %v1909 = vpop.f32.mrf.mxu0
        %v1910 = vadd.f32 0.0, %v1909
        %v1911 = vpop.f32.mrf.mxu0
        %v1912 = vadd.f32 0.0, %v1911
        %1913 = vmatprep.mubr.f32.mxu0 %v1410
        %1914 = vmatmul.mubr.f32.gmra.mxu0 %v1409
        %v1915 = vpop.f32.mrf.mxu0
        %v1916 = vadd.f32 0.0, %v1915
        %v1917 = vpop.f32.mrf.mxu0
        %v1918 = vadd.f32 0.0, %v1917
        %1919 = vmatprep.mubr.f32.mxu0 %v1412
        %1920 = vmatmul.mubr.f32.gmra.mxu0 %v1411
        %v1921 = vpop.f32.mrf.mxu0
        %v1922 = vadd.f32 0.0, %v1921
        %v1923 = vpop.f32.mrf.mxu0
        %v1924 = vadd.f32 0.0, %v1923
        %1925 = vdwg.mxu0
        %1926 = vst [vmem:[%s180] sm:$0xff] %v1544
        %1927 = vst [vmem:[%s180 + $0x8] sm:$0xff] %v1546
        %1928 = vst [vmem:[%s180 + $0x10] sm:$0xff] %v1550
        %1929 = vst [vmem:[%s180 + $0x18] sm:$0xff] %v1552
        %1930 = vst [vmem:[%s180 + $0x20] sm:$0xff] %v1556
        %1931 = vst [vmem:[%s180 + $0x28] sm:$0xff] %v1558
        %1932 = vst [vmem:[%s180 + $0x30] sm:$0xff] %v1562
        %1933 = vst [vmem:[%s180 + $0x38] sm:$0xff] %v1564
        %1934 = vst [vmem:[%s180 + $0x40] sm:$0xff] %v1568
        %1935 = vst [vmem:[%s180 + $0x48] sm:$0xff] %v1570
        %1936 = vst [vmem:[%s180 + $0x50] sm:$0xff] %v1574
        %1937 = vst [vmem:[%s180 + $0x58] sm:$0xff] %v1576
        %1938 = vst [vmem:[%s180 + $0x60] sm:$0xff] %v1580
        %1939 = vst [vmem:[%s180 + $0x68] sm:$0xff] %v1582
        %1940 = vst [vmem:[%s180 + $0x70] sm:$0xff] %v1586
        %1941 = vst [vmem:[%s180 + $0x78] sm:$0xff] %v1588
        %1942 = vst [vmem:[%s180 + $0x80] sm:$0xff] %v1592
        %1943 = vst [vmem:[%s180 + $0x88] sm:$0xff] %v1594
        %1944 = vst [vmem:[%s180 + $0x90] sm:$0xff] %v1598
        %1945 = vst [vmem:[%s180 + $0x98] sm:$0xff] %v1600
        %1946 = vst [vmem:[%s180 + $0xa0] sm:$0xff] %v1604
        %1947 = vst [vmem:[%s180 + $0xa8] sm:$0xff] %v1606
        %1948 = vst [vmem:[%s180 + $0xb0] sm:$0xff] %v1610
        %1949 = vst [vmem:[%s180 + $0xb8] sm:$0xff] %v1612
        %1950 = vst [vmem:[%s180 + $0xc0] sm:$0xff] %v1616
        %1951 = vst [vmem:[%s180 + $0xc8] sm:$0xff] %v1618
        %1952 = vst [vmem:[%s180 + $0xd0] sm:$0xff] %v1622
        %1953 = vst [vmem:[%s180 + $0xd8] sm:$0xff] %v1624
        %1954 = vst [vmem:[%s180 + $0xe0] sm:$0xff] %v1628
        %1955 = vst [vmem:[%s180 + $0xe8] sm:$0xff] %v1630
        %1956 = vst [vmem:[%s180 + $0xf0] sm:$0xff] %v1634
        %1957 = vst [vmem:[%s180 + $0xf8] sm:$0xff] %v1636
        %1958 = vst [vmem:[%s180 + $0x100] sm:$0xff] %v1640
        %1959 = vst [vmem:[%s180 + $0x108] sm:$0xff] %v1642
        %1960 = vst [vmem:[%s180 + $0x110] sm:$0xff] %v1646
        %1961 = vst [vmem:[%s180 + $0x118] sm:$0xff] %v1648
        %1962 = vst [vmem:[%s180 + $0x120] sm:$0xff] %v1652
        %1963 = vst [vmem:[%s180 + $0x128] sm:$0xff] %v1654
        %1964 = vst [vmem:[%s180 + $0x130] sm:$0xff] %v1658
        %1965 = vst [vmem:[%s180 + $0x138] sm:$0xff] %v1660
        %1966 = vst [vmem:[%s180 + $0x140] sm:$0xff] %v1664
        %1967 = vst [vmem:[%s180 + $0x148] sm:$0xff] %v1666
        %1968 = vst [vmem:[%s180 + $0x150] sm:$0xff] %v1670
        %1969 = vst [vmem:[%s180 + $0x158] sm:$0xff] %v1672
        %1970 = vst [vmem:[%s180 + $0x160] sm:$0xff] %v1676
        %1971 = vst [vmem:[%s180 + $0x168] sm:$0xff] %v1678
        %1972 = vst [vmem:[%s180 + $0x170] sm:$0xff] %v1682
        %1973 = vst [vmem:[%s180 + $0x178] sm:$0xff] %v1684
        %1974 = vst [vmem:[%s180 + $0x180] sm:$0xff] %v1688
        %1975 = vst [vmem:[%s180 + $0x188] sm:$0xff] %v1690
        %1976 = vst [vmem:[%s180 + $0x190] sm:$0xff] %v1694
        %1977 = vst [vmem:[%s180 + $0x198] sm:$0xff] %v1696
        %1978 = vst [vmem:[%s180 + $0x1a0] sm:$0xff] %v1700
        %1979 = vst [vmem:[%s180 + $0x1a8] sm:$0xff] %v1702
        %1980 = vst [vmem:[%s180 + $0x1b0] sm:$0xff] %v1706
        %1981 = vst [vmem:[%s180 + $0x1b8] sm:$0xff] %v1708
        %1982 = vst [vmem:[%s180 + $0x1c0] sm:$0xff] %v1712
        %1983 = vst [vmem:[%s180 + $0x1c8] sm:$0xff] %v1714
        %1984 = vst [vmem:[%s180 + $0x1d0] sm:$0xff] %v1718
        %1985 = vst [vmem:[%s180 + $0x1d8] sm:$0xff] %v1720
        %1986 = vst [vmem:[%s180 + $0x1e0] sm:$0xff] %v1724
        %1987 = vst [vmem:[%s180 + $0x1e8] sm:$0xff] %v1726
        %1988 = vst [vmem:[%s180 + $0x1f0] sm:$0xff] %v1730
        %1989 = vst [vmem:[%s180 + $0x1f8] sm:$0xff] %v1732
        %1990 = vst [vmem:[%s180 + $0x200] sm:$0xff] %v1736
        %1991 = vst [vmem:[%s180 + $0x208] sm:$0xff] %v1738
        %1992 = vst [vmem:[%s180 + $0x210] sm:$0xff] %v1742
        %1993 = vst [vmem:[%s180 + $0x218] sm:$0xff] %v1744
        %1994 = vst [vmem:[%s180 + $0x220] sm:$0xff] %v1748
        %1995 = vst [vmem:[%s180 + $0x228] sm:$0xff] %v1750
        %1996 = vst [vmem:[%s180 + $0x230] sm:$0xff] %v1754
        %1997 = vst [vmem:[%s180 + $0x238] sm:$0xff] %v1756
        %1998 = vst [vmem:[%s180 + $0x240] sm:$0xff] %v1760
        %1999 = vst [vmem:[%s180 + $0x248] sm:$0xff] %v1762
        %2000 = vst [vmem:[%s180 + $0x250] sm:$0xff] %v1766
        %2001 = vst [vmem:[%s180 + $0x258] sm:$0xff] %v1768
        %2002 = vst [vmem:[%s180 + $0x260] sm:$0xff] %v1772
        %2003 = vst [vmem:[%s180 + $0x268] sm:$0xff] %v1774
        %2004 = vst [vmem:[%s180 + $0x270] sm:$0xff] %v1778
        %2005 = vst [vmem:[%s180 + $0x278] sm:$0xff] %v1780
        %2006 = vst [vmem:[%s180 + $0x280] sm:$0xff] %v1784
        %2007 = vst [vmem:[%s180 + $0x288] sm:$0xff] %v1786
        %2008 = vst [vmem:[%s180 + $0x290] sm:$0xff] %v1790
        %2009 = vst [vmem:[%s180 + $0x298] sm:$0xff] %v1792
        %2010 = vst [vmem:[%s180 + $0x2a0] sm:$0xff] %v1796
        %2011 = vst [vmem:[%s180 + $0x2a8] sm:$0xff] %v1798
        %2012 = vst [vmem:[%s180 + $0x2b0] sm:$0xff] %v1802
        %2013 = vst [vmem:[%s180 + $0x2b8] sm:$0xff] %v1804
        %2014 = vst [vmem:[%s180 + $0x2c0] sm:$0xff] %v1808
        %2015 = vst [vmem:[%s180 + $0x2c8] sm:$0xff] %v1810
        %2016 = vst [vmem:[%s180 + $0x2d0] sm:$0xff] %v1814
        %2017 = vst [vmem:[%s180 + $0x2d8] sm:$0xff] %v1816
        %2018 = vst [vmem:[%s180 + $0x2e0] sm:$0xff] %v1820
        %2019 = vst [vmem:[%s180 + $0x2e8] sm:$0xff] %v1822
        %2020 = vst [vmem:[%s180 + $0x2f0] sm:$0xff] %v1826
        %2021 = vst [vmem:[%s180 + $0x2f8] sm:$0xff] %v1828
        %2022 = vst [vmem:[%s180 + $0x300] sm:$0xff] %v1832
        %2023 = vst [vmem:[%s180 + $0x308] sm:$0xff] %v1834
        %2024 = vst [vmem:[%s180 + $0x310] sm:$0xff] %v1838
        %2025 = vst [vmem:[%s180 + $0x318] sm:$0xff] %v1840
        %2026 = vst [vmem:[%s180 + $0x320] sm:$0xff] %v1844
        %2027 = vst [vmem:[%s180 + $0x328] sm:$0xff] %v1846
        %2028 = vst [vmem:[%s180 + $0x330] sm:$0xff] %v1850
        %2029 = vst [vmem:[%s180 + $0x338] sm:$0xff] %v1852
        %2030 = vst [vmem:[%s180 + $0x340] sm:$0xff] %v1856
        %2031 = vst [vmem:[%s180 + $0x348] sm:$0xff] %v1858
        %2032 = vst [vmem:[%s180 + $0x350] sm:$0xff] %v1862
        %2033 = vst [vmem:[%s180 + $0x358] sm:$0xff] %v1864
        %2034 = vst [vmem:[%s180 + $0x360] sm:$0xff] %v1868
        %2035 = vst [vmem:[%s180 + $0x368] sm:$0xff] %v1870
        %2036 = vst [vmem:[%s180 + $0x370] sm:$0xff] %v1874
        %2037 = vst [vmem:[%s180 + $0x378] sm:$0xff] %v1876
        %2038 = vst [vmem:[%s180 + $0x380] sm:$0xff] %v1880
        %2039 = vst [vmem:[%s180 + $0x388] sm:$0xff] %v1882
        %2040 = vst [vmem:[%s180 + $0x390] sm:$0xff] %v1886
        %2041 = vst [vmem:[%s180 + $0x398] sm:$0xff] %v1888
        %2042 = vst [vmem:[%s180 + $0x3a0] sm:$0xff] %v1892
        %2043 = vst [vmem:[%s180 + $0x3a8] sm:$0xff] %v1894
        %2044 = vst [vmem:[%s180 + $0x3b0] sm:$0xff] %v1898
        %2045 = vst [vmem:[%s180 + $0x3b8] sm:$0xff] %v1900
        %2046 = vst [vmem:[%s180 + $0x3c0] sm:$0xff] %v1904
        %2047 = vst [vmem:[%s180 + $0x3c8] sm:$0xff] %v1906
        %2048 = vst [vmem:[%s180 + $0x3d0] sm:$0xff] %v1910
        %2049 = vst [vmem:[%s180 + $0x3d8] sm:$0xff] %v1912
        %2050 = vst [vmem:[%s180 + $0x3e0] sm:$0xff] %v1916
        %2051 = vst [vmem:[%s180 + $0x3e8] sm:$0xff] %v1918
        %2052 = vst [vmem:[%s180 + $0x3f0] sm:$0xff] %v1922
        %2053 = vst [vmem:[%s180 + $0x3f8] sm:$0xff] %v1924
        %s2054 = sand.u32 %s98, 1
        %s2055 = scalar_lea.sflag [#allocation3], %s2054
        %s2056 = sand.u32 %s98, 1
        %s2057 = smul.addr %s2056, 1024
        %s2058 = scalar_lea.vmem [#allocation2], %s2057
        // Predicated region
        $region33: #{tpu_custom_call.1} parent=31 // pred_check
          %p2059 = pneg %p108
        $region34: #{tpu_custom_call.1} parent=31 // pred_check_branch
          %2061 = sbr.rel (%p2059) target = $region36
        $region35: #{tpu_custom_call.1} parent=31 // pred_region
          %s2062 = smul.u32 64, %s17
          %s2064 = ssub.s32 16384, 16384
          %2065 = vsyncadd %s2055, %s2064
          %s2066 = smul.addr %s2062, 2
          %s2067 = smul.addr %s2066, 128
          %s2068 = scalar_lea.hbm %s3, %s2067
          %s2069 = sshll.u32 %s2058, 4
          %s2070 = int_to_ptr.vmem [resolvable:$true] %s2069
          %2075 = dma.vmem_to_hbm [thread:$0]  %s2070, 16384, %s2068, %s2055, 256, 256, 16
        $region36: #{tpu_custom_call.1} parent=31 // pred_fallthru
          _
      $region32: #{tpu_custom_call.1} parent=5 // pred_fallthru
        _
      %p2076 = scmp.le.s32.totalorder 2, %s12
      // Predicated region
      $region37: #{tpu_custom_call.1} parent=5 // pred_check
        %p2077 = pneg %p2076
      $region38: #{tpu_custom_call.1} parent=5 // pred_check_branch
        %2079 = sbr.rel (%p2077) target = $region40
      $region39: #{tpu_custom_call.1} parent=5 // pred_region
        %s2080 = ssub.s32 %s12, 2
        // Predicated region
        $region41: #{tpu_custom_call.1} parent=39 // pred_check
          %p2081 = pneg %p114
        $region42: #{tpu_custom_call.1} parent=39 // pred_check_branch
          %2083 = sbr.rel (%p2081) target = $region44
        $region43: #{tpu_custom_call.1} parent=39 // pred_region
          %s2084 = sand.u32 %s99, 1
          %s2085 = scalar_lea.sflag [#allocation3], %s2084
          %s2086 = sand.u32 %s99, 1
          %s2087 = smul.addr %s2086, 1024
          %s2088 = scalar_lea.vmem [#allocation2], %s2087
          %2089 = dma.done %s2085, 16384
        $region44: #{tpu_custom_call.1} parent=39 // pred_fallthru
          _
      $region40: #{tpu_custom_call.1} parent=5 // pred_fallthru
        _
    $region6: #{tpu_custom_call.1} parent=1 // loop_footer
      %s16 = sadd.s32 1, %s12
    $region7: #{tpu_custom_call.1} parent=1 // loop_footer_branch
      %11 = sbr.rel target = $region3
    $region8: #{tpu_custom_call.1} parent=1 // loop_exit
      _
    %2090 = vsyncpa [#allocation3], 1
    %s2091 = scalar_lea.sflag [#allocation3], 1
    %2092 = vsyncpa %s2091, 1

</llo_original>
